<compile_context>
chip_gen: v7x
topology: tpu7x:2x2x1
jax: 0.10.0
libtpu: 0.0.40
codegen_flags: <defaults>
</compile_context>

<pallas_src>
import jax
import jax.numpy as jnp
from jax.experimental import pallas as pl
from jax.experimental.pallas import tpu as pltpu


TOPN = 2                    # self.topn in the module
NODE_DIM = 32               # per-node feature dim (synthetic; original is 200+9)
EDGE_ATTR_DIM = 6           # [zflow1, zflow2, dx, dy, w_ratio, h_ratio]
EDGE_OUT_DIM = 16           # tss_config['classifier_feats_dict']['edge_out_dim']
FC_DIMS = [128, 64, 32, TOPN + 1]   # classifier fc_dims (last = topn+1 classes)
OUT_PAD = 128               # lane-dense padded width of the final layer


# ----------------------------------------------------------------------------
# Fused kernel: gather + edge-MLP + grouping + classifier, one row-tile of N1
# per grid step.  Weights / x are VMEM-resident (constant index maps).
# ----------------------------------------------------------------------------
def _stitch_kernel(eidx_ref, attr_ref, x_ref,
                   we_src_ref, we_dst_ref, we_attr_ref, be_ref,
                   w1_ref, b1_ref, w2_ref, b2_ref, w3_ref, b3_ref,
                   w4_ref, b4_ref, o_ref):
    f32 = jnp.float32
    bf16 = jnp.bfloat16

    x = x_ref[...]                                   # [n_nodes, NODE_DIM] bf16
    eidx = eidx_ref[...]                             # [tile, 2*TOPN] int32
    attr = attr_ref[...]                             # [tile, TOPN*EDGE_ATTR_DIM] bf16
    tile = eidx.shape[0]
    n_nodes = x.shape[0]

    # Hoisted edge-MLP projections (amortized over the TOPN slots): the gather
    # below then contracts over K=EDGE_OUT_DIM instead of K=NODE_DIM.
    y_src = jnp.dot(x, we_src_ref[...],
                    preferred_element_type=f32).astype(bf16)   # [n_nodes, 16]
    y_dst = jnp.dot(x, we_dst_ref[...],
                    preferred_element_type=f32).astype(bf16)   # [n_nodes, 16]

    # one-hot row-gather via MXU: sel[e, n] = (idx[e] == n)
    node_iota = jax.lax.broadcasted_iota(jnp.int32, (tile, n_nodes), 1)

    def onehot(col):
        return (eidx[:, col:col + 1] == node_iota).astype(bf16)   # [tile, n_nodes]

    we_attr = we_attr_ref[...]                       # [EDGE_ATTR_DIM, 16] bf16
    be = be_ref[...]                                 # [1, 16] f32
    w1 = w1_ref[...]                                 # [TOPN*16, 128] bf16

    # Classifier layer 1 accumulated over the TOPN edge slots per source node:
    # exactly  concat([e_0 | e_1]) @ w1  without materializing the concat.
    acc1 = jnp.zeros((tile, w1.shape[1]), f32)
    # TOPN == 2: static unroll is fine.  If TOPN grows, switch to
    # lax.fori_loop(..., unroll=True) to bound vreg live ranges.
    for t in range(TOPN):
        e_t = (jnp.dot(onehot(t), y_src, preferred_element_type=f32)
               + jnp.dot(onehot(TOPN + t), y_dst, preferred_element_type=f32)
               + jnp.dot(attr[:, t * EDGE_ATTR_DIM:(t + 1) * EDGE_ATTR_DIM],
                         we_attr, preferred_element_type=f32)
               + be)                                  # edge-MLP pre-activation
        e_t = jnp.maximum(e_t, 0.0).astype(bf16)      # relu (f32), then bf16 for MXU
        acc1 = acc1 + jnp.dot(
            e_t, w1[t * EDGE_OUT_DIM:(t + 1) * EDGE_OUT_DIM, :],
            preferred_element_type=f32)

    # classifier (BN folded into w/b on host; Dropout eval = no-op)
    h = jnp.maximum(acc1 + b1_ref[...], 0.0).astype(bf16)                      # [tile,128]
    h = jnp.maximum(jnp.dot(h, w2_ref[...], preferred_element_type=f32)
                    + b2_ref[...], 0.0).astype(bf16)                           # [tile,64]
    h = jnp.maximum(jnp.dot(h, w3_ref[...], preferred_element_type=f32)
                    + b3_ref[...], 0.0).astype(bf16)                           # [tile,32]
    out = jnp.dot(h, w4_ref[...], preferred_element_type=f32) + b4_ref[...]    # [tile,128]
    o_ref[...] = out.astype(o_ref.dtype)


# ----------------------------------------------------------------------------
# Parameters (synthetic, deterministic) + host-side BN fold / weight split.
# ----------------------------------------------------------------------------
def init_params(key):
    keys = jax.random.split(key, 1 + len(FC_DIMS))
    params = {}
    # TODO(synk): TSS internals are not provided in the source; we use a single
    # edge-MLP message-passing step producing per-edge features of dim
    # EDGE_OUT_DIM (same output contract as nets(...)[-1]).
    d_in = 2 * NODE_DIM + EDGE_ATTR_DIM
    params["edge_w"] = 0.1 * jax.random.normal(keys[0], (d_in, EDGE_OUT_DIM),
                                               jnp.float32)
    params["edge_b"] = jnp.zeros((EDGE_OUT_DIM,), jnp.float32)

    dims = [EDGE_OUT_DIM * TOPN] + FC_DIMS
    layers = []
    for i in range(len(FC_DIMS)):
        w = 0.1 * jax.random.normal(keys[1 + i], (dims[i], dims[i + 1]),
                                    jnp.float32)
        b = jnp.zeros((dims[i + 1],), jnp.float32)
        bn = dict(gamma=jnp.ones((dims[i + 1],), jnp.float32),   # PyTorch BN
                  beta=jnp.zeros((dims[i + 1],), jnp.float32),   # default init,
                  mean=jnp.zeros((dims[i + 1],), jnp.float32),   # eval mode
                  var=jnp.ones((dims[i + 1],), jnp.float32))
        layers.append((w, b, bn))
    params["cls"] = layers
    return params


def prepare_params(params, eps=1e-5):
    """Split edge_w by input block, fold eval BN into classifier w/b, pad the
    final layer to OUT_PAD lanes; weights -> bf16 (MXU inputs), biases -> f32."""
    we = params["edge_w"]
    flat = [we[:NODE_DIM].astype(jnp.bfloat16),             # W_src  [32,16]
            we[NODE_DIM:2 * NODE_DIM].astype(jnp.bfloat16),  # W_dst  [32,16]
            we[2 * NODE_DIM:].astype(jnp.bfloat16),          # W_attr [6,16]
            params["edge_b"].reshape(1, -1).astype(jnp.float32)]
    n_layers = len(params["cls"])
    for i, (w, b, bn) in enumerate(params["cls"]):
        if i < n_layers - 1:                    # hidden layers: fold BN (eval)
            # TODO(synk): assumes (as in standard MLP impls) there is no BN
            # after the final fc layer.
            scale = bn["gamma"] * jax.lax.rsqrt(bn["var"] + eps)
            w = w * scale[None, :]
            b = (b - bn["mean"]) * scale + bn["beta"]
        else:                                   # final layer: pad to 128 lanes
            w = jnp.pad(w, ((0, 0), (0, OUT_PAD - w.shape[1])))
            b = jnp.pad(b, ((0, OUT_PAD - b.shape[0]),))
        flat.extend([w.astype(jnp.bfloat16),
                     b.reshape(1, -1).astype(jnp.float32)])
    return tuple(flat)


# ----------------------------------------------------------------------------
# Forward wrapper: one pallas_call, 1-D "parallel" grid over N1 row tiles.
# ----------------------------------------------------------------------------
def stitch_forward(flat_params, x, edge_index, edge_attr, *, tile_n1=8):
    """x: [N_nodes, NODE_DIM], edge_index: [2, E] int32, edge_attr: [E, 6]."""
    E = edge_index.shape[1]
    n1 = E // TOPN
    n_nodes = x.shape[0]

    # In preprocess, each source node emits exactly TOPN consecutive edges and
    # sources are sorted, so the torch unique/mask/stack grouping is a pure
    # per-node reshape over the TOPN edge slots (structural assumption).
    src = edge_index[0].reshape(n1, TOPN).astype(jnp.int32)
    dst = edge_index[1].reshape(n1, TOPN).astype(jnp.int32)
    eidx = jnp.concatenate([src, dst], axis=-1)              # [N1, 2*TOPN] int32
    attr = edge_attr.reshape(n1, TOPN * EDGE_ATTR_DIM).astype(jnp.bfloat16)

    # Pad N1 to a multiple of the row tile (padded rows are sliced off below).
    n_tiles = pl.cdiv(n1, tile_n1)
    n1p = n_tiles * tile_n1
    if n1p != n1:
        eidx = jnp.pad(eidx, ((0, n1p - n1), (0, 0)))
        attr = jnp.pad(attr, ((0, n1p - n1), (0, 0)))

    x_b = x.astype(jnp.bfloat16)

    row_map = lambda i: (i, 0)      # blocked along N1
    const_map = lambda i: (0, 0)    # DMA once, VMEM-resident across the grid

    args = (eidx, attr, x_b) + tuple(flat_params)
    in_specs = [
        pl.BlockSpec((tile_n1, 2 * TOPN), row_map),
        pl.BlockSpec((tile_n1, TOPN * EDGE_ATTR_DIM), row_map),
        pl.BlockSpec((n_nodes, NODE_DIM), const_map),
    ] + [pl.BlockSpec(p.shape, const_map) for p in flat_params]

    out = pl.pallas_call(
        _stitch_kernel,
        grid=(n_tiles,),
        out_shape=jax.ShapeDtypeStruct((n1p, OUT_PAD), jnp.float32),
        in_specs=in_specs,
        out_specs=pl.BlockSpec((tile_n1, OUT_PAD), row_map),
        compiler_params=pltpu.CompilerParams(
            dimension_semantics=("parallel",)),   # v7x: shard rows over 2 TCs
    )(*args)
    return out[:n1, :TOPN + 1]


if __name__ == "__main__":
    key = jax.random.PRNGKey(0)
    k_param, k_x, k_attr = jax.random.split(key, 3)

    N1 = N2 = 16
    n_nodes = N1 + N2
    n_edges = N1 * TOPN

    params = init_params(k_param)
    flat_params = prepare_params(params)

    # node features for both slices (output of run_all_node, synthetic here)
    x = jax.random.normal(k_x, (n_nodes, NODE_DIM), jnp.float32)

    # edge_index as produced by preprocess/build_one_graph: each slice-1 node i
    # connects to TOPN nearest slice-2 nodes (indices offset by N1).
    src = jnp.repeat(jnp.arange(N1, dtype=jnp.int32), TOPN)
    dst = (N1 + (jnp.repeat(jnp.arange(N1, dtype=jnp.int32), TOPN)
                 + jnp.tile(jnp.arange(TOPN, dtype=jnp.int32), N1)) % N2)
    edge_index = jnp.stack([src, dst])                      # [2, 32]

    # edge_attr = [zflow1, zflow2, dx, dy, w_ratio, h_ratio] per edge
    edge_attr = jax.random.normal(k_attr, (n_edges, EDGE_ATTR_DIM), jnp.float32)

    fwd = jax.jit(stitch_forward)
    out = fwd(flat_params, x, edge_index, edge_attr)
    jax.block_until_ready(out)
    assert out.shape == (N1, TOPN + 1), out.shape
    print("KERNEL_OK")
</pallas_src>

<mosaic_0001>
module attributes {stable_mosaic.version = 11 : i64} {
  func.func @_stitch_kernel(%arg0: i32, %arg1: memref<8x4xi32, #tpu.memory_space<vmem>>, %arg2: memref<8x12xbf16, #tpu.memory_space<vmem>>, %arg3: memref<32x32xbf16, #tpu.memory_space<vmem>>, %arg4: memref<32x16xbf16, #tpu.memory_space<vmem>>, %arg5: memref<32x16xbf16, #tpu.memory_space<vmem>>, %arg6: memref<6x16xbf16, #tpu.memory_space<vmem>>, %arg7: memref<1x16xf32, #tpu.memory_space<vmem>>, %arg8: memref<32x128xbf16, #tpu.memory_space<vmem>>, %arg9: memref<1x128xf32, #tpu.memory_space<vmem>>, %arg10: memref<128x64xbf16, #tpu.memory_space<vmem>>, %arg11: memref<1x64xf32, #tpu.memory_space<vmem>>, %arg12: memref<64x32xbf16, #tpu.memory_space<vmem>>, %arg13: memref<1x32xf32, #tpu.memory_space<vmem>>, %arg14: memref<32x128xbf16, #tpu.memory_space<vmem>>, %arg15: memref<1x128xf32, #tpu.memory_space<vmem>>, %arg16: memref<8x128xf32, #tpu.memory_space<vmem>>) attributes {dimension_semantics = [#tpu.dimension_semantics<parallel>], iteration_bounds = array<i64: 2>, scalar_prefetch = 0 : i64, scratch_operands = 0 : i64, tpu.core_type = #tpu.core_type<tc>, window_params = [{transform_indices = @transform_0, window_bounds = array<i64: 8, 4>}, {transform_indices = @transform_1, window_bounds = array<i64: 8, 12>}, {pipeline_mode = #tpu.pipeline_mode<synchronous>, transform_indices = @transform_2, window_bounds = array<i64: 32, 32>}, {pipeline_mode = #tpu.pipeline_mode<synchronous>, transform_indices = @transform_3, window_bounds = array<i64: 32, 16>}, {pipeline_mode = #tpu.pipeline_mode<synchronous>, transform_indices = @transform_4, window_bounds = array<i64: 32, 16>}, {pipeline_mode = #tpu.pipeline_mode<synchronous>, transform_indices = @transform_5, window_bounds = array<i64: 6, 16>}, {pipeline_mode = #tpu.pipeline_mode<synchronous>, transform_indices = @transform_6, window_bounds = array<i64: 1, 16>}, {pipeline_mode = #tpu.pipeline_mode<synchronous>, transform_indices = @transform_7, window_bounds = array<i64: 32, 128>}, {pipeline_mode = #tpu.pipeline_mode<synchronous>, transform_indices = @transform_8, window_bounds = array<i64: 1, 128>}, {pipeline_mode = #tpu.pipeline_mode<synchronous>, transform_indices = @transform_9, window_bounds = array<i64: 128, 64>}, {pipeline_mode = #tpu.pipeline_mode<synchronous>, transform_indices = @transform_10, window_bounds = array<i64: 1, 64>}, {pipeline_mode = #tpu.pipeline_mode<synchronous>, transform_indices = @transform_11, window_bounds = array<i64: 64, 32>}, {pipeline_mode = #tpu.pipeline_mode<synchronous>, transform_indices = @transform_12, window_bounds = array<i64: 1, 32>}, {pipeline_mode = #tpu.pipeline_mode<synchronous>, transform_indices = @transform_13, window_bounds = array<i64: 32, 128>}, {pipeline_mode = #tpu.pipeline_mode<synchronous>, transform_indices = @transform_14, window_bounds = array<i64: 1, 128>}, {transform_indices = @transform_15, window_bounds = array<i64: 8, 128>}]} {
    %c0 = arith.constant 0 : index
    %c0_0 = arith.constant 0 : index
    %0 = vector.load %arg3[%c0, %c0_0] : memref<32x32xbf16, #tpu.memory_space<vmem>>, vector<32x32xbf16>
    %c0_1 = arith.constant 0 : index
    %c0_2 = arith.constant 0 : index
    %1 = vector.load %arg1[%c0_1, %c0_2] : memref<8x4xi32, #tpu.memory_space<vmem>>, vector<8x4xi32>
    %c0_3 = arith.constant 0 : index
    %c0_4 = arith.constant 0 : index
    %2 = vector.load %arg2[%c0_3, %c0_4] : memref<8x12xbf16, #tpu.memory_space<vmem>>, vector<8x12xbf16>
    %c0_5 = arith.constant 0 : index
    %c0_6 = arith.constant 0 : index
    %3 = vector.load %arg4[%c0_5, %c0_6] : memref<32x16xbf16, #tpu.memory_space<vmem>>, vector<32x16xbf16>
    %cst = arith.constant dense<0.000000e+00> : vector<32x16xf32>
    %4 = tpu.matmul %0, %3, %cst {dimension_numbers = #tpu.dot_dimension_numbers<[1], [0], [0], [1], [0, 0, 1, 1], [], []>} : vector<32x32xbf16>, vector<32x16xbf16>, vector<32x16xf32> -> vector<32x16xf32>
    %5 = arith.truncf %4 : vector<32x16xf32> to vector<32x16xbf16>
    %c0_7 = arith.constant 0 : index
    %c0_8 = arith.constant 0 : index
    %6 = vector.load %arg5[%c0_7, %c0_8] : memref<32x16xbf16, #tpu.memory_space<vmem>>, vector<32x16xbf16>
    %cst_9 = arith.constant dense<0.000000e+00> : vector<32x16xf32>
    %7 = tpu.matmul %0, %6, %cst_9 {dimension_numbers = #tpu.dot_dimension_numbers<[1], [0], [0], [1], [0, 0, 1, 1], [], []>} : vector<32x32xbf16>, vector<32x16xbf16>, vector<32x16xf32> -> vector<32x16xf32>
    %8 = arith.truncf %7 : vector<32x16xf32> to vector<32x16xbf16>
    %9 = tpu.iota {dimensions = array<i32: 1>} : vector<8x32xi32>
    %c0_10 = arith.constant 0 : index
    %c0_11 = arith.constant 0 : index
    %10 = vector.load %arg6[%c0_10, %c0_11] : memref<6x16xbf16, #tpu.memory_space<vmem>>, vector<6x16xbf16>
    %c0_12 = arith.constant 0 : index
    %c0_13 = arith.constant 0 : index
    %11 = vector.load %arg7[%c0_12, %c0_13] : memref<1x16xf32, #tpu.memory_space<vmem>>, vector<1x16xf32>
    %c0_14 = arith.constant 0 : index
    %c0_15 = arith.constant 0 : index
    %12 = vector.load %arg8[%c0_14, %c0_15] : memref<32x128xbf16, #tpu.memory_space<vmem>>, vector<32x128xbf16>
    %cst_16 = arith.constant 0.000000e+00 : f32
    %13 = vector.broadcast %cst_16 : f32 to vector<8x128xf32>
    %14 = vector.extract_strided_slice %1 {offsets = [0, 0], sizes = [8, 1], strides = [1, 1]} : vector<8x4xi32> to vector<8x1xi32>
    %15 = vector.broadcast %14 : vector<8x1xi32> to vector<8x32xi32>
    %16 = arith.cmpi eq, %15, %9 : vector<8x32xi32>
    %17 = arith.extui %16 : vector<8x32xi1> to vector<8x32xi32>
    %18 = arith.sitofp %17 : vector<8x32xi32> to vector<8x32xf32>
    %19 = arith.truncf %18 : vector<8x32xf32> to vector<8x32xbf16>
    %cst_17 = arith.constant dense<0.000000e+00> : vector<8x16xf32>
    %20 = tpu.matmul %19, %5, %cst_17 {dimension_numbers = #tpu.dot_dimension_numbers<[1], [0], [0], [1], [0, 0, 1, 1], [], []>} : vector<8x32xbf16>, vector<32x16xbf16>, vector<8x16xf32> -> vector<8x16xf32>
    %21 = vector.extract_strided_slice %1 {offsets = [0, 2], sizes = [8, 1], strides = [1, 1]} : vector<8x4xi32> to vector<8x1xi32>
    %22 = vector.broadcast %21 : vector<8x1xi32> to vector<8x32xi32>
    %23 = arith.cmpi eq, %22, %9 : vector<8x32xi32>
    %24 = arith.extui %23 : vector<8x32xi1> to vector<8x32xi32>
    %25 = arith.sitofp %24 : vector<8x32xi32> to vector<8x32xf32>
    %26 = arith.truncf %25 : vector<8x32xf32> to vector<8x32xbf16>
    %cst_18 = arith.constant dense<0.000000e+00> : vector<8x16xf32>
    %27 = tpu.matmul %26, %8, %cst_18 {dimension_numbers = #tpu.dot_dimension_numbers<[1], [0], [0], [1], [0, 0, 1, 1], [], []>} : vector<8x32xbf16>, vector<32x16xbf16>, vector<8x16xf32> -> vector<8x16xf32>
    %28 = arith.addf %20, %27 : vector<8x16xf32>
    %29 = vector.extract_strided_slice %2 {offsets = [0, 0], sizes = [8, 6], strides = [1, 1]} : vector<8x12xbf16> to vector<8x6xbf16>
    %cst_19 = arith.constant dense<0.000000e+00> : vector<8x16xf32>
    %30 = tpu.matmul %29, %10, %cst_19 {dimension_numbers = #tpu.dot_dimension_numbers<[1], [0], [0], [1], [0, 0, 1, 1], [], []>} : vector<8x6xbf16>, vector<6x16xbf16>, vector<8x16xf32> -> vector<8x16xf32>
    %31 = arith.addf %28, %30 : vector<8x16xf32>
    %32 = vector.broadcast %11 : vector<1x16xf32> to vector<8x16xf32>
    %33 = arith.addf %31, %32 : vector<8x16xf32>
    %cst_20 = arith.constant 0.000000e+00 : f32
    %34 = vector.broadcast %cst_20 : f32 to vector<8x16xf32>
    %35 = arith.maximumf %33, %34 : vector<8x16xf32>
    %36 = arith.truncf %35 : vector<8x16xf32> to vector<8x16xbf16>
    %37 = vector.extract_strided_slice %12 {offsets = [0, 0], sizes = [16, 128], strides = [1, 1]} : vector<32x128xbf16> to vector<16x128xbf16>
    %cst_21 = arith.constant dense<0.000000e+00> : vector<8x128xf32>
    %38 = tpu.matmul %36, %37, %cst_21 {dimension_numbers = #tpu.dot_dimension_numbers<[1], [0], [0], [1], [0, 0, 1, 1], [], []>} : vector<8x16xbf16>, vector<16x128xbf16>, vector<8x128xf32> -> vector<8x128xf32>
    %39 = arith.addf %13, %38 : vector<8x128xf32>
    %40 = vector.extract_strided_slice %1 {offsets = [0, 1], sizes = [8, 1], strides = [1, 1]} : vector<8x4xi32> to vector<8x1xi32>
    %41 = vector.broadcast %40 : vector<8x1xi32> to vector<8x32xi32>
    %42 = arith.cmpi eq, %41, %9 : vector<8x32xi32>
    %43 = arith.extui %42 : vector<8x32xi1> to vector<8x32xi32>
    %44 = arith.sitofp %43 : vector<8x32xi32> to vector<8x32xf32>
    %45 = arith.truncf %44 : vector<8x32xf32> to vector<8x32xbf16>
    %cst_22 = arith.constant dense<0.000000e+00> : vector<8x16xf32>
    %46 = tpu.matmul %45, %5, %cst_22 {dimension_numbers = #tpu.dot_dimension_numbers<[1], [0], [0], [1], [0, 0, 1, 1], [], []>} : vector<8x32xbf16>, vector<32x16xbf16>, vector<8x16xf32> -> vector<8x16xf32>
    %47 = vector.extract_strided_slice %1 {offsets = [0, 3], sizes = [8, 1], strides = [1, 1]} : vector<8x4xi32> to vector<8x1xi32>
    %48 = vector.broadcast %47 : vector<8x1xi32> to vector<8x32xi32>
    %49 = arith.cmpi eq, %48, %9 : vector<8x32xi32>
    %50 = arith.extui %49 : vector<8x32xi1> to vector<8x32xi32>
    %51 = arith.sitofp %50 : vector<8x32xi32> to vector<8x32xf32>
    %52 = arith.truncf %51 : vector<8x32xf32> to vector<8x32xbf16>
    %cst_23 = arith.constant dense<0.000000e+00> : vector<8x16xf32>
    %53 = tpu.matmul %52, %8, %cst_23 {dimension_numbers = #tpu.dot_dimension_numbers<[1], [0], [0], [1], [0, 0, 1, 1], [], []>} : vector<8x32xbf16>, vector<32x16xbf16>, vector<8x16xf32> -> vector<8x16xf32>
    %54 = arith.addf %46, %53 : vector<8x16xf32>
    %55 = vector.extract_strided_slice %2 {offsets = [0, 6], sizes = [8, 6], strides = [1, 1]} : vector<8x12xbf16> to vector<8x6xbf16>
    %cst_24 = arith.constant dense<0.000000e+00> : vector<8x16xf32>
    %56 = tpu.matmul %55, %10, %cst_24 {dimension_numbers = #tpu.dot_dimension_numbers<[1], [0], [0], [1], [0, 0, 1, 1], [], []>} : vector<8x6xbf16>, vector<6x16xbf16>, vector<8x16xf32> -> vector<8x16xf32>
    %57 = arith.addf %54, %56 : vector<8x16xf32>
    %58 = vector.broadcast %11 : vector<1x16xf32> to vector<8x16xf32>
    %59 = arith.addf %57, %58 : vector<8x16xf32>
    %cst_25 = arith.constant 0.000000e+00 : f32
    %60 = vector.broadcast %cst_25 : f32 to vector<8x16xf32>
    %61 = arith.maximumf %59, %60 : vector<8x16xf32>
    %62 = arith.truncf %61 : vector<8x16xf32> to vector<8x16xbf16>
    %63 = vector.extract_strided_slice %12 {offsets = [16, 0], sizes = [16, 128], strides = [1, 1]} : vector<32x128xbf16> to vector<16x128xbf16>
    %cst_26 = arith.constant dense<0.000000e+00> : vector<8x128xf32>
    %64 = tpu.matmul %62, %63, %cst_26 {dimension_numbers = #tpu.dot_dimension_numbers<[1], [0], [0], [1], [0, 0, 1, 1], [], []>} : vector<8x16xbf16>, vector<16x128xbf16>, vector<8x128xf32> -> vector<8x128xf32>
    %65 = arith.addf %39, %64 : vector<8x128xf32>
    %c0_27 = arith.constant 0 : index
    %c0_28 = arith.constant 0 : index
    %66 = vector.load %arg9[%c0_27, %c0_28] : memref<1x128xf32, #tpu.memory_space<vmem>>, vector<1x128xf32>
    %67 = vector.broadcast %66 : vector<1x128xf32> to vector<8x128xf32>
    %68 = arith.addf %65, %67 : vector<8x128xf32>
    %cst_29 = arith.constant 0.000000e+00 : f32
    %69 = vector.broadcast %cst_29 : f32 to vector<8x128xf32>
    %70 = arith.maximumf %68, %69 : vector<8x128xf32>
    %71 = arith.truncf %70 : vector<8x128xf32> to vector<8x128xbf16>
    %c0_30 = arith.constant 0 : index
    %c0_31 = arith.constant 0 : index
    %72 = vector.load %arg10[%c0_30, %c0_31] : memref<128x64xbf16, #tpu.memory_space<vmem>>, vector<128x64xbf16>
    %cst_32 = arith.constant dense<0.000000e+00> : vector<8x64xf32>
    %73 = tpu.matmul %71, %72, %cst_32 {dimension_numbers = #tpu.dot_dimension_numbers<[1], [0], [0], [1], [0, 0, 1, 1], [], []>} : vector<8x128xbf16>, vector<128x64xbf16>, vector<8x64xf32> -> vector<8x64xf32>
    %c0_33 = arith.constant 0 : index
    %c0_34 = arith.constant 0 : index
    %74 = vector.load %arg11[%c0_33, %c0_34] : memref<1x64xf32, #tpu.memory_space<vmem>>, vector<1x64xf32>
    %75 = vector.broadcast %74 : vector<1x64xf32> to vector<8x64xf32>
    %76 = arith.addf %73, %75 : vector<8x64xf32>
    %cst_35 = arith.constant 0.000000e+00 : f32
    %77 = vector.broadcast %cst_35 : f32 to vector<8x64xf32>
    %78 = arith.maximumf %76, %77 : vector<8x64xf32>
    %79 = arith.truncf %78 : vector<8x64xf32> to vector<8x64xbf16>
    %c0_36 = arith.constant 0 : index
    %c0_37 = arith.constant 0 : index
    %80 = vector.load %arg12[%c0_36, %c0_37] : memref<64x32xbf16, #tpu.memory_space<vmem>>, vector<64x32xbf16>
    %cst_38 = arith.constant dense<0.000000e+00> : vector<8x32xf32>
    %81 = tpu.matmul %79, %80, %cst_38 {dimension_numbers = #tpu.dot_dimension_numbers<[1], [0], [0], [1], [0, 0, 1, 1], [], []>} : vector<8x64xbf16>, vector<64x32xbf16>, vector<8x32xf32> -> vector<8x32xf32>
    %c0_39 = arith.constant 0 : index
    %c0_40 = arith.constant 0 : index
    %82 = vector.load %arg13[%c0_39, %c0_40] : memref<1x32xf32, #tpu.memory_space<vmem>>, vector<1x32xf32>
    %83 = vector.broadcast %82 : vector<1x32xf32> to vector<8x32xf32>
    %84 = arith.addf %81, %83 : vector<8x32xf32>
    %cst_41 = arith.constant 0.000000e+00 : f32
    %85 = vector.broadcast %cst_41 : f32 to vector<8x32xf32>
    %86 = arith.maximumf %84, %85 : vector<8x32xf32>
    %87 = arith.truncf %86 : vector<8x32xf32> to vector<8x32xbf16>
    %c0_42 = arith.constant 0 : index
    %c0_43 = arith.constant 0 : index
    %88 = vector.load %arg14[%c0_42, %c0_43] : memref<32x128xbf16, #tpu.memory_space<vmem>>, vector<32x128xbf16>
    %cst_44 = arith.constant dense<0.000000e+00> : vector<8x128xf32>
    %89 = tpu.matmul %87, %88, %cst_44 {dimension_numbers = #tpu.dot_dimension_numbers<[1], [0], [0], [1], [0, 0, 1, 1], [], []>} : vector<8x32xbf16>, vector<32x128xbf16>, vector<8x128xf32> -> vector<8x128xf32>
    %c0_45 = arith.constant 0 : index
    %c0_46 = arith.constant 0 : index
    %90 = vector.load %arg15[%c0_45, %c0_46] : memref<1x128xf32, #tpu.memory_space<vmem>>, vector<1x128xf32>
    %91 = vector.broadcast %90 : vector<1x128xf32> to vector<8x128xf32>
    %92 = arith.addf %89, %91 : vector<8x128xf32>
    %c0_47 = arith.constant 0 : index
    %c0_48 = arith.constant 0 : index
    %93 = vector.load %arg16[%c0_47, %c0_48] : memref<8x128xf32, #tpu.memory_space<vmem>>, vector<8x128xf32>
    tpu.vector_store %arg16[%c0_47, %c0_48], %92 {strides = array<i32>} : memref<8x128xf32, #tpu.memory_space<vmem>>, vector<8x128xf32>,
    return
  }
  func.func @transform_0(%arg0: i32) -> (i32, i32) {
    %c0_i32 = arith.constant 0 : i32
    %c0_i32_0 = arith.constant 0 : i32
    return %arg0, %c0_i32 : i32, i32
  }
  func.func @transform_1(%arg0: i32) -> (i32, i32) {
    %c0_i32 = arith.constant 0 : i32
    %c0_i32_0 = arith.constant 0 : i32
    return %arg0, %c0_i32 : i32, i32
  }
  func.func @transform_2(%arg0: i32) -> (i32, i32) {
    %c0_i32 = arith.constant 0 : i32
    %c0_i32_0 = arith.constant 0 : i32
    %c0_i32_1 = arith.constant 0 : i32
    return %c0_i32, %c0_i32_0 : i32, i32
  }
  func.func @transform_3(%arg0: i32) -> (i32, i32) {
    %c0_i32 = arith.constant 0 : i32
    %c0_i32_0 = arith.constant 0 : i32
    %c0_i32_1 = arith.constant 0 : i32
    return %c0_i32, %c0_i32_0 : i32, i32
  }
  func.func @transform_4(%arg0: i32) -> (i32, i32) {
    %c0_i32 = arith.constant 0 : i32
    %c0_i32_0 = arith.constant 0 : i32
    %c0_i32_1 = arith.constant 0 : i32
    return %c0_i32, %c0_i32_0 : i32, i32
  }
  func.func @transform_5(%arg0: i32) -> (i32, i32) {
    %c0_i32 = arith.constant 0 : i32
    %c0_i32_0 = arith.constant 0 : i32
    %c0_i32_1 = arith.constant 0 : i32
    return %c0_i32, %c0_i32_0 : i32, i32
  }
  func.func @transform_6(%arg0: i32) -> (i32, i32) {
    %c0_i32 = arith.constant 0 : i32
    %c0_i32_0 = arith.constant 0 : i32
    %c0_i32_1 = arith.constant 0 : i32
    return %c0_i32, %c0_i32_0 : i32, i32
  }
  func.func @transform_7(%arg0: i32) -> (i32, i32) {
    %c0_i32 = arith.constant 0 : i32
    %c0_i32_0 = arith.constant 0 : i32
    %c0_i32_1 = arith.constant 0 : i32
    return %c0_i32, %c0_i32_0 : i32, i32
  }
  func.func @transform_8(%arg0: i32) -> (i32, i32) {
    %c0_i32 = arith.constant 0 : i32
    %c0_i32_0 = arith.constant 0 : i32
    %c0_i32_1 = arith.constant 0 : i32
    return %c0_i32, %c0_i32_0 : i32, i32
  }
  func.func @transform_9(%arg0: i32) -> (i32, i32) {
    %c0_i32 = arith.constant 0 : i32
    %c0_i32_0 = arith.constant 0 : i32
    %c0_i32_1 = arith.constant 0 : i32
    return %c0_i32, %c0_i32_0 : i32, i32
  }
  func.func @transform_10(%arg0: i32) -> (i32, i32) {
    %c0_i32 = arith.constant 0 : i32
    %c0_i32_0 = arith.constant 0 : i32
    %c0_i32_1 = arith.constant 0 : i32
    return %c0_i32, %c0_i32_0 : i32, i32
  }
  func.func @transform_11(%arg0: i32) -> (i32, i32) {
    %c0_i32 = arith.constant 0 : i32
    %c0_i32_0 = arith.constant 0 : i32
    %c0_i32_1 = arith.constant 0 : i32
    return %c0_i32, %c0_i32_0 : i32, i32
  }
  func.func @transform_12(%arg0: i32) -> (i32, i32) {
    %c0_i32 = arith.constant 0 : i32
    %c0_i32_0 = arith.constant 0 : i32
    %c0_i32_1 = arith.constant 0 : i32
    return %c0_i32, %c0_i32_0 : i32, i32
  }
  func.func @transform_13(%arg0: i32) -> (i32, i32) {
    %c0_i32 = arith.constant 0 : i32
    %c0_i32_0 = arith.constant 0 : i32
    %c0_i32_1 = arith.constant 0 : i32
    return %c0_i32, %c0_i32_0 : i32, i32
  }
  func.func @transform_14(%arg0: i32) -> (i32, i32) {
    %c0_i32 = arith.constant 0 : i32
    %c0_i32_0 = arith.constant 0 : i32
    %c0_i32_1 = arith.constant 0 : i32
    return %c0_i32, %c0_i32_0 : i32, i32
  }
  func.func @transform_15(%arg0: i32) -> (i32, i32) {
    %c0_i32 = arith.constant 0 : i32
    %c0_i32_0 = arith.constant 0 : i32
    return %arg0, %c0_i32 : i32, i32
  }
}

</mosaic_0001>

<llo_original>
// kernel: squeeze.2
$region0: #{squeeze.2}
  %s0 = inlined_call_operand.vmem [shape: s32[32], index: 0, kind: input, shape index: {}]
  %s1 = inlined_call_operand.vmem [shape: s32[16,2], index: 1, kind: output, shape index: {}]
  $region1: #{squeeze.2} parent=0
    #allocation0 [shape = 'u8[4096]{0}', space=vmem, size = 0x1000, scoped, tag = 'scoped mem for input reshape']
    %s3 = sshllo.u32 0, 1
    %v4 = vld [vmem:[%s0] sm:%s3]
    %5 = vst [vmem:[#allocation0] sm:%s3] %v4
    %v6 = vld [vmem:[#allocation0] sm:$0x1]
    %vm7 = vcmask 15360
    %8 = vst.msk [vmem:[%s1] sm:$0x1] %vm7, %v6
    %v9 = vld [vmem:[#allocation0] sm:$0x1]
    %10 = vrot.lane.b32.xlu0 %v9, 126
    %v11 = vpop.permute.xlu0 %10
    %vm12 = vcmask 15360
    %s13 = scalar_lea.vmem %s1, 1
    %14 = vst.msk [vmem:[%s13] sm:$0x1] %vm12, %v11
    %v15 = vld [vmem:[#allocation0] sm:$0x1]
    %16 = vrot.lane.b32.xlu0 %v15, 124
    %v17 = vpop.permute.xlu0 %16
    %vm18 = vcmask 15360
    %s19 = scalar_lea.vmem %s1, 2
    %20 = vst.msk [vmem:[%s19] sm:$0x1] %vm18, %v17
    %v21 = vld [vmem:[#allocation0] sm:$0x1]
    %22 = vrot.lane.b32.xlu0 %v21, 122
    %v23 = vpop.permute.xlu0 %22
    %vm24 = vcmask 15360
    %s25 = scalar_lea.vmem %s1, 3
    %26 = vst.msk [vmem:[%s25] sm:$0x1] %vm24, %v23
    %v27 = vld [vmem:[#allocation0] sm:$0x1]
    %28 = vrot.lane.b32.xlu0 %v27, 120
    %v29 = vpop.permute.xlu0 %28
    %vm30 = vcmask 15360
    %s31 = scalar_lea.vmem %s1, 4
    %32 = vst.msk [vmem:[%s31] sm:$0x1] %vm30, %v29
    %v33 = vld [vmem:[#allocation0] sm:$0x1]
    %34 = vrot.lane.b32.xlu0 %v33, 118
    %v35 = vpop.permute.xlu0 %34
    %vm36 = vcmask 15360
    %s37 = scalar_lea.vmem %s1, 5
    %38 = vst.msk [vmem:[%s37] sm:$0x1] %vm36, %v35
    %v39 = vld [vmem:[#allocation0] sm:$0x1]
    %40 = vrot.lane.b32.xlu0 %v39, 116
    %v41 = vpop.permute.xlu0 %40
    %vm42 = vcmask 15360
    %s43 = scalar_lea.vmem %s1, 6
    %44 = vst.msk [vmem:[%s43] sm:$0x1] %vm42, %v41
    %v45 = vld [vmem:[#allocation0] sm:$0x1]
    %46 = vrot.lane.b32.xlu0 %v45, 114
    %v47 = vpop.permute.xlu0 %46
    %vm48 = vcmask 15360
    %s49 = scalar_lea.vmem %s1, 7
    %50 = vst.msk [vmem:[%s49] sm:$0x1] %vm48, %v47
    %v51 = vld [vmem:[#allocation0] sm:$0x1]
    %52 = vrot.lane.b32.xlu0 %v51, 112
    %v53 = vpop.permute.xlu0 %52
    %vm54 = vcmask 15360
    %s55 = scalar_lea.vmem %s1, 8
    %56 = vst.msk [vmem:[%s55] sm:$0x1] %vm54, %v53
    %v57 = vld [vmem:[#allocation0] sm:$0x1]
    %58 = vrot.lane.b32.xlu0 %v57, 110
    %v59 = vpop.permute.xlu0 %58
    %vm60 = vcmask 15360
    %s61 = scalar_lea.vmem %s1, 9
    %62 = vst.msk [vmem:[%s61] sm:$0x1] %vm60, %v59
    %v63 = vld [vmem:[#allocation0] sm:$0x1]
    %64 = vrot.lane.b32.xlu0 %v63, 108
    %v65 = vpop.permute.xlu0 %64
    %vm66 = vcmask 15360
    %s67 = scalar_lea.vmem %s1, 10
    %68 = vst.msk [vmem:[%s67] sm:$0x1] %vm66, %v65
    %v69 = vld [vmem:[#allocation0] sm:$0x1]
    %70 = vrot.lane.b32.xlu0 %v69, 106
    %v71 = vpop.permute.xlu0 %70
    %vm72 = vcmask 15360
    %s73 = scalar_lea.vmem %s1, 11
    %74 = vst.msk [vmem:[%s73] sm:$0x1] %vm72, %v71
    %v75 = vld [vmem:[#allocation0] sm:$0x1]
    %76 = vrot.lane.b32.xlu0 %v75, 104
    %v77 = vpop.permute.xlu0 %76
    %vm78 = vcmask 15360
    %s79 = scalar_lea.vmem %s1, 12
    %80 = vst.msk [vmem:[%s79] sm:$0x1] %vm78, %v77
    %v81 = vld [vmem:[#allocation0] sm:$0x1]
    %82 = vrot.lane.b32.xlu0 %v81, 102
    %v83 = vpop.permute.xlu0 %82
    %vm84 = vcmask 15360
    %s85 = scalar_lea.vmem %s1, 13
    %86 = vst.msk [vmem:[%s85] sm:$0x1] %vm84, %v83
    %v87 = vld [vmem:[#allocation0] sm:$0x1]
    %88 = vrot.lane.b32.xlu0 %v87, 100
    %v89 = vpop.permute.xlu0 %88
    %vm90 = vcmask 15360
    %s91 = scalar_lea.vmem %s1, 14
    %92 = vst.msk [vmem:[%s91] sm:$0x1] %vm90, %v89
    %v93 = vld [vmem:[#allocation0] sm:$0x1]
    %94 = vrot.lane.b32.xlu0 %v93, 98
    %v95 = vpop.permute.xlu0 %94
    %vm96 = vcmask 15360
    %s97 = scalar_lea.vmem %s1, 15
    %98 = vst.msk [vmem:[%s97] sm:$0x1] %vm96, %v95

// kernel: stitch_forward.1
$region0: #{stitch_forward.1}
  #allocation0 [shape = 'u32[]', space=smem, size = 0x4, offset = 0x4, fixed_abs, tag = 'smem constant byte address 0x4 - core index']
  #allocation1 [shape = 'u32[144,128]{1,0:T(1,128)}', space=vmem, size = 0x12000, scoped, tag = 'internal scratch']
  %s0 = inlined_call_operand.vmem [shape: s32[16,4], index: 0, kind: input, shape index: {}]
  %s1 = inlined_call_operand.vmem [shape: bf16[16,12], index: 1, kind: input, shape index: {}]
  %s2 = inlined_call_operand.vmem [shape: bf16[32,32], index: 2, kind: input, shape index: {}]
  %s3 = inlined_call_operand.vmem [shape: bf16[32,16], index: 3, kind: input, shape index: {}]
  %s4 = inlined_call_operand.vmem [shape: bf16[32,16], index: 4, kind: input, shape index: {}]
  %s5 = inlined_call_operand.vmem [shape: bf16[6,16], index: 5, kind: input, shape index: {}]
  %s6 = inlined_call_operand.vmem [shape: f32[1,16], index: 6, kind: input, shape index: {}]
  %s7 = inlined_call_operand.vmem [shape: bf16[32,128], index: 7, kind: input, shape index: {}]
  %s8 = inlined_call_operand.vmem [shape: f32[1,128], index: 8, kind: input, shape index: {}]
  %s9 = inlined_call_operand.vmem [shape: bf16[128,64], index: 9, kind: input, shape index: {}]
  %s10 = inlined_call_operand.vmem [shape: f32[1,64], index: 10, kind: input, shape index: {}]
  %s11 = inlined_call_operand.vmem [shape: bf16[64,32], index: 11, kind: input, shape index: {}]
  %s12 = inlined_call_operand.vmem [shape: f32[1,32], index: 12, kind: input, shape index: {}]
  %s13 = inlined_call_operand.vmem [shape: bf16[32,128], index: 13, kind: input, shape index: {}]
  %s14 = inlined_call_operand.vmem [shape: f32[1,128], index: 14, kind: input, shape index: {}]
  %s15 = inlined_call_operand.vmem [shape: f32[16,128], index: 15, kind: output, shape index: {}]
  %s16 = sld [smem:[#allocation0]]
  $region93: #{stitch_forward.1} parent=0
    _
  %s18 = ssub.s32 1, %s16
  %s19 = scalar_select 0, %s18, %s16
  loop: start=0, step=1, limit=4
  $region2: #{stitch_forward.1} parent=0 // loop_pre_header
    _
  $region3: #{stitch_forward.1} parent=0 // loop_header
    %s21 = sphi 0, %s25
    %p22 = scmp.ge.s32.totalorder %s21, 4
    %s31 = sphi 0, %s33
    %s34 = sphi 0, %s31
    %s35 = sphi 0, %s34
    %s51 = sphi 0, %s35
    %s57 = sphi 0, %s59
    %s60 = sphi 0, %s57
    %s61 = sphi 0, %s60
    %s77 = sphi 0, %s61
    %s81 = sphi 0, %s81
    %s83 = sphi 0, %s81
    %s84 = sphi 0, %s83
    %s98 = sphi 0, %s84
    %s102 = sphi 0, %s102
    %s104 = sphi 0, %s102
    %s105 = sphi 0, %s104
    %s119 = sphi 0, %s105
    %s123 = sphi 0, %s123
    %s125 = sphi 0, %s123
    %s126 = sphi 0, %s125
    %s140 = sphi 0, %s126
    %s144 = sphi 0, %s144
    %s146 = sphi 0, %s144
    %s147 = sphi 0, %s146
    %s161 = sphi 0, %s147
    %s165 = sphi 0, %s165
    %s167 = sphi 0, %s165
    %s168 = sphi 0, %s167
    %s182 = sphi 0, %s168
    %s186 = sphi 0, %s186
    %s188 = sphi 0, %s186
    %s189 = sphi 0, %s188
    %s203 = sphi 0, %s189
    %s207 = sphi 0, %s207
    %s209 = sphi 0, %s207
    %s210 = sphi 0, %s209
    %s224 = sphi 0, %s210
    %s228 = sphi 0, %s228
    %s230 = sphi 0, %s228
    %s231 = sphi 0, %s230
    %s245 = sphi 0, %s231
    %s249 = sphi 0, %s249
    %s251 = sphi 0, %s249
    %s252 = sphi 0, %s251
    %s266 = sphi 0, %s252
    %s270 = sphi 0, %s270
    %s272 = sphi 0, %s270
    %s273 = sphi 0, %s272
    %s287 = sphi 0, %s273
    %s291 = sphi 0, %s291
    %s293 = sphi 0, %s291
    %s294 = sphi 0, %s293
    %s308 = sphi 0, %s294
    %s312 = sphi 0, %s312
    %s314 = sphi 0, %s312
    %s315 = sphi 0, %s314
    %s329 = sphi 0, %s315
    %s333 = sphi 0, %s333
    %s335 = sphi 0, %s333
    %s336 = sphi 0, %s335
    %s350 = sphi 0, %s336
    %s356 = sphi 0, %s358
    %s359 = sphi 0, %s356
    %s360 = sphi 0, %s359
    %s376 = sphi 0, %s360
  $region4: #{stitch_forward.1} parent=0 // loop_header_branch
    %24 = sbr.rel (%p22) target = $region8
  $region5: #{stitch_forward.1} parent=0 // loop_body
    %s26 = ssub.s32 %s21, 1
    %s27 = ssub.s32 %s21, 2
    %s28 = sadd.s32 %s21, 1
    %s29 = ssub.s32 %s21, %s28
    %p30 = scmp.eq.s32.totalorder %s29, 0
    %s32 = sadd.s32 %s31, 1
    %s33 = scalar_select %p30, %s31, %s32
    %p36 = pneg %p30
    %p37 = scmp.eq.s32.totalorder %s21, 1
    %p38 = por %p36, %p37
    %p39 = scmp.ne.s32.totalorder %s31, %s34
    %p40 = scmp.eq.s32.totalorder %s21, 0
    %p41 = por %p39, %p40
    %p42 = scmp.ne.s32.totalorder %s31, %s34
    %p43 = scmp.eq.s32.totalorder %s26, 1
    %p44 = por %p42, %p43
    %p45 = scmp.ne.s32.totalorder %s34, %s35
    %p46 = scmp.eq.s32.totalorder %s26, 0
    %p47 = por %p45, %p46
    %p48 = scmp.ne.s32.totalorder %s34, %s35
    %p49 = scmp.eq.s32.totalorder %s27, 1
    %p50 = por %p48, %p49
    %p52 = scmp.ne.s32.totalorder %s35, %s51
    %p53 = scmp.eq.s32.totalorder %s27, 0
    %p54 = por %p52, %p53
    %s55 = ssub.s32 %s21, %s28
    %p56 = scmp.eq.s32.totalorder %s55, 0
    %s58 = sadd.s32 %s57, 1
    %s59 = scalar_select %p56, %s57, %s58
    %p62 = pneg %p56
    %p63 = scmp.eq.s32.totalorder %s21, 1
    %p64 = por %p62, %p63
    %p65 = scmp.ne.s32.totalorder %s57, %s60
    %p66 = scmp.eq.s32.totalorder %s21, 0
    %p67 = por %p65, %p66
    %p68 = scmp.ne.s32.totalorder %s57, %s60
    %p69 = scmp.eq.s32.totalorder %s26, 1
    %p70 = por %p68, %p69
    %p71 = scmp.ne.s32.totalorder %s60, %s61
    %p72 = scmp.eq.s32.totalorder %s26, 0
    %p73 = por %p71, %p72
    %p74 = scmp.ne.s32.totalorder %s60, %s61
    %p75 = scmp.eq.s32.totalorder %s27, 1
    %p76 = por %p74, %p75
    %p78 = scmp.ne.s32.totalorder %s61, %s77
    %p79 = scmp.eq.s32.totalorder %s27, 0
    %p80 = por %p78, %p79
    %s82 = sadd.s32 %s81, 1
    %p85 = scmp.eq.s32.totalorder %s21, 1
    %p86 = scmp.ne.s32.totalorder %s81, %s83
    %p87 = scmp.eq.s32.totalorder %s21, 0
    %p88 = por %p86, %p87
    %p89 = scmp.ne.s32.totalorder %s81, %s83
    %p90 = scmp.eq.s32.totalorder %s26, 1
    %p91 = por %p89, %p90
    %p92 = scmp.ne.s32.totalorder %s83, %s84
    %p93 = scmp.eq.s32.totalorder %s26, 0
    %p94 = por %p92, %p93
    %p95 = scmp.ne.s32.totalorder %s83, %s84
    %p96 = scmp.eq.s32.totalorder %s27, 1
    %p97 = por %p95, %p96
    %p99 = scmp.ne.s32.totalorder %s84, %s98
    %p100 = scmp.eq.s32.totalorder %s27, 0
    %p101 = por %p99, %p100
    %s103 = sadd.s32 %s102, 1
    %p106 = scmp.eq.s32.totalorder %s21, 1
    %p107 = scmp.ne.s32.totalorder %s102, %s104
    %p108 = scmp.eq.s32.totalorder %s21, 0
    %p109 = por %p107, %p108
    %p110 = scmp.ne.s32.totalorder %s102, %s104
    %p111 = scmp.eq.s32.totalorder %s26, 1
    %p112 = por %p110, %p111
    %p113 = scmp.ne.s32.totalorder %s104, %s105
    %p114 = scmp.eq.s32.totalorder %s26, 0
    %p115 = por %p113, %p114
    %p116 = scmp.ne.s32.totalorder %s104, %s105
    %p117 = scmp.eq.s32.totalorder %s27, 1
    %p118 = por %p116, %p117
    %p120 = scmp.ne.s32.totalorder %s105, %s119
    %p121 = scmp.eq.s32.totalorder %s27, 0
    %p122 = por %p120, %p121
    %s124 = sadd.s32 %s123, 1
    %p127 = scmp.eq.s32.totalorder %s21, 1
    %p128 = scmp.ne.s32.totalorder %s123, %s125
    %p129 = scmp.eq.s32.totalorder %s21, 0
    %p130 = por %p128, %p129
    %p131 = scmp.ne.s32.totalorder %s123, %s125
    %p132 = scmp.eq.s32.totalorder %s26, 1
    %p133 = por %p131, %p132
    %p134 = scmp.ne.s32.totalorder %s125, %s126
    %p135 = scmp.eq.s32.totalorder %s26, 0
    %p136 = por %p134, %p135
    %p137 = scmp.ne.s32.totalorder %s125, %s126
    %p138 = scmp.eq.s32.totalorder %s27, 1
    %p139 = por %p137, %p138
    %p141 = scmp.ne.s32.totalorder %s126, %s140
    %p142 = scmp.eq.s32.totalorder %s27, 0
    %p143 = por %p141, %p142
    %s145 = sadd.s32 %s144, 1
    %p148 = scmp.eq.s32.totalorder %s21, 1
    %p149 = scmp.ne.s32.totalorder %s144, %s146
    %p150 = scmp.eq.s32.totalorder %s21, 0
    %p151 = por %p149, %p150
    %p152 = scmp.ne.s32.totalorder %s144, %s146
    %p153 = scmp.eq.s32.totalorder %s26, 1
    %p154 = por %p152, %p153
    %p155 = scmp.ne.s32.totalorder %s146, %s147
    %p156 = scmp.eq.s32.totalorder %s26, 0
    %p157 = por %p155, %p156
    %p158 = scmp.ne.s32.totalorder %s146, %s147
    %p159 = scmp.eq.s32.totalorder %s27, 1
    %p160 = por %p158, %p159
    %p162 = scmp.ne.s32.totalorder %s147, %s161
    %p163 = scmp.eq.s32.totalorder %s27, 0
    %p164 = por %p162, %p163
    %s166 = sadd.s32 %s165, 1
    %p169 = scmp.eq.s32.totalorder %s21, 1
    %p170 = scmp.ne.s32.totalorder %s165, %s167
    %p171 = scmp.eq.s32.totalorder %s21, 0
    %p172 = por %p170, %p171
    %p173 = scmp.ne.s32.totalorder %s165, %s167
    %p174 = scmp.eq.s32.totalorder %s26, 1
    %p175 = por %p173, %p174
    %p176 = scmp.ne.s32.totalorder %s167, %s168
    %p177 = scmp.eq.s32.totalorder %s26, 0
    %p178 = por %p176, %p177
    %p179 = scmp.ne.s32.totalorder %s167, %s168
    %p180 = scmp.eq.s32.totalorder %s27, 1
    %p181 = por %p179, %p180
    %p183 = scmp.ne.s32.totalorder %s168, %s182
    %p184 = scmp.eq.s32.totalorder %s27, 0
    %p185 = por %p183, %p184
    %s187 = sadd.s32 %s186, 1
    %p190 = scmp.eq.s32.totalorder %s21, 1
    %p191 = scmp.ne.s32.totalorder %s186, %s188
    %p192 = scmp.eq.s32.totalorder %s21, 0
    %p193 = por %p191, %p192
    %p194 = scmp.ne.s32.totalorder %s186, %s188
    %p195 = scmp.eq.s32.totalorder %s26, 1
    %p196 = por %p194, %p195
    %p197 = scmp.ne.s32.totalorder %s188, %s189
    %p198 = scmp.eq.s32.totalorder %s26, 0
    %p199 = por %p197, %p198
    %p200 = scmp.ne.s32.totalorder %s188, %s189
    %p201 = scmp.eq.s32.totalorder %s27, 1
    %p202 = por %p200, %p201
    %p204 = scmp.ne.s32.totalorder %s189, %s203
    %p205 = scmp.eq.s32.totalorder %s27, 0
    %p206 = por %p204, %p205
    %s208 = sadd.s32 %s207, 1
    %p211 = scmp.eq.s32.totalorder %s21, 1
    %p212 = scmp.ne.s32.totalorder %s207, %s209
    %p213 = scmp.eq.s32.totalorder %s21, 0
    %p214 = por %p212, %p213
    %p215 = scmp.ne.s32.totalorder %s207, %s209
    %p216 = scmp.eq.s32.totalorder %s26, 1
    %p217 = por %p215, %p216
    %p218 = scmp.ne.s32.totalorder %s209, %s210
    %p219 = scmp.eq.s32.totalorder %s26, 0
    %p220 = por %p218, %p219
    %p221 = scmp.ne.s32.totalorder %s209, %s210
    %p222 = scmp.eq.s32.totalorder %s27, 1
    %p223 = por %p221, %p222
    %p225 = scmp.ne.s32.totalorder %s210, %s224
    %p226 = scmp.eq.s32.totalorder %s27, 0
    %p227 = por %p225, %p226
    %s229 = sadd.s32 %s228, 1
    %p232 = scmp.eq.s32.totalorder %s21, 1
    %p233 = scmp.ne.s32.totalorder %s228, %s230
    %p234 = scmp.eq.s32.totalorder %s21, 0
    %p235 = por %p233, %p234
    %p236 = scmp.ne.s32.totalorder %s228, %s230
    %p237 = scmp.eq.s32.totalorder %s26, 1
    %p238 = por %p236, %p237
    %p239 = scmp.ne.s32.totalorder %s230, %s231
    %p240 = scmp.eq.s32.totalorder %s26, 0
    %p241 = por %p239, %p240
    %p242 = scmp.ne.s32.totalorder %s230, %s231
    %p243 = scmp.eq.s32.totalorder %s27, 1
    %p244 = por %p242, %p243
    %p246 = scmp.ne.s32.totalorder %s231, %s245
    %p247 = scmp.eq.s32.totalorder %s27, 0
    %p248 = por %p246, %p247
    %s250 = sadd.s32 %s249, 1
    %p253 = scmp.eq.s32.totalorder %s21, 1
    %p254 = scmp.ne.s32.totalorder %s249, %s251
    %p255 = scmp.eq.s32.totalorder %s21, 0
    %p256 = por %p254, %p255
    %p257 = scmp.ne.s32.totalorder %s249, %s251
    %p258 = scmp.eq.s32.totalorder %s26, 1
    %p259 = por %p257, %p258
    %p260 = scmp.ne.s32.totalorder %s251, %s252
    %p261 = scmp.eq.s32.totalorder %s26, 0
    %p262 = por %p260, %p261
    %p263 = scmp.ne.s32.totalorder %s251, %s252
    %p264 = scmp.eq.s32.totalorder %s27, 1
    %p265 = por %p263, %p264
    %p267 = scmp.ne.s32.totalorder %s252, %s266
    %p268 = scmp.eq.s32.totalorder %s27, 0
    %p269 = por %p267, %p268
    %s271 = sadd.s32 %s270, 1
    %p274 = scmp.eq.s32.totalorder %s21, 1
    %p275 = scmp.ne.s32.totalorder %s270, %s272
    %p276 = scmp.eq.s32.totalorder %s21, 0
    %p277 = por %p275, %p276
    %p278 = scmp.ne.s32.totalorder %s270, %s272
    %p279 = scmp.eq.s32.totalorder %s26, 1
    %p280 = por %p278, %p279
    %p281 = scmp.ne.s32.totalorder %s272, %s273
    %p282 = scmp.eq.s32.totalorder %s26, 0
    %p283 = por %p281, %p282
    %p284 = scmp.ne.s32.totalorder %s272, %s273
    %p285 = scmp.eq.s32.totalorder %s27, 1
    %p286 = por %p284, %p285
    %p288 = scmp.ne.s32.totalorder %s273, %s287
    %p289 = scmp.eq.s32.totalorder %s27, 0
    %p290 = por %p288, %p289
    %s292 = sadd.s32 %s291, 1
    %p295 = scmp.eq.s32.totalorder %s21, 1
    %p296 = scmp.ne.s32.totalorder %s291, %s293
    %p297 = scmp.eq.s32.totalorder %s21, 0
    %p298 = por %p296, %p297
    %p299 = scmp.ne.s32.totalorder %s291, %s293
    %p300 = scmp.eq.s32.totalorder %s26, 1
    %p301 = por %p299, %p300
    %p302 = scmp.ne.s32.totalorder %s293, %s294
    %p303 = scmp.eq.s32.totalorder %s26, 0
    %p304 = por %p302, %p303
    %p305 = scmp.ne.s32.totalorder %s293, %s294
    %p306 = scmp.eq.s32.totalorder %s27, 1
    %p307 = por %p305, %p306
    %p309 = scmp.ne.s32.totalorder %s294, %s308
    %p310 = scmp.eq.s32.totalorder %s27, 0
    %p311 = por %p309, %p310
    %s313 = sadd.s32 %s312, 1
    %p316 = scmp.eq.s32.totalorder %s21, 1
    %p317 = scmp.ne.s32.totalorder %s312, %s314
    %p318 = scmp.eq.s32.totalorder %s21, 0
    %p319 = por %p317, %p318
    %p320 = scmp.ne.s32.totalorder %s312, %s314
    %p321 = scmp.eq.s32.totalorder %s26, 1
    %p322 = por %p320, %p321
    %p323 = scmp.ne.s32.totalorder %s314, %s315
    %p324 = scmp.eq.s32.totalorder %s26, 0
    %p325 = por %p323, %p324
    %p326 = scmp.ne.s32.totalorder %s314, %s315
    %p327 = scmp.eq.s32.totalorder %s27, 1
    %p328 = por %p326, %p327
    %p330 = scmp.ne.s32.totalorder %s315, %s329
    %p331 = scmp.eq.s32.totalorder %s27, 0
    %p332 = por %p330, %p331
    %s334 = sadd.s32 %s333, 1
    %p337 = scmp.eq.s32.totalorder %s21, 1
    %p338 = scmp.ne.s32.totalorder %s333, %s335
    %p339 = scmp.eq.s32.totalorder %s21, 0
    %p340 = por %p338, %p339
    %p341 = scmp.ne.s32.totalorder %s333, %s335
    %p342 = scmp.eq.s32.totalorder %s26, 1
    %p343 = por %p341, %p342
    %p344 = scmp.ne.s32.totalorder %s335, %s336
    %p345 = scmp.eq.s32.totalorder %s26, 0
    %p346 = por %p344, %p345
    %p347 = scmp.ne.s32.totalorder %s335, %s336
    %p348 = scmp.eq.s32.totalorder %s27, 1
    %p349 = por %p347, %p348
    %p351 = scmp.ne.s32.totalorder %s336, %s350
    %p352 = scmp.eq.s32.totalorder %s27, 0
    %p353 = por %p351, %p352
    %s354 = ssub.s32 %s21, %s28
    %p355 = scmp.eq.s32.totalorder %s354, 0
    %s357 = sadd.s32 %s356, 1
    %s358 = scalar_select %p355, %s356, %s357
    %p361 = pneg %p355
    %p362 = scmp.eq.s32.totalorder %s21, 1
    %p363 = por %p361, %p362
    %p364 = scmp.ne.s32.totalorder %s356, %s359
    %p365 = scmp.eq.s32.totalorder %s21, 0
    %p366 = por %p364, %p365
    %p367 = scmp.ne.s32.totalorder %s356, %s359
    %p368 = scmp.eq.s32.totalorder %s26, 1
    %p369 = por %p367, %p368
    %p370 = scmp.ne.s32.totalorder %s359, %s360
    %p371 = scmp.eq.s32.totalorder %s26, 0
    %p372 = por %p370, %p371
    %p373 = scmp.ne.s32.totalorder %s359, %s360
    %p374 = scmp.eq.s32.totalorder %s27, 1
    %p375 = por %p373, %p374
    %p377 = scmp.ne.s32.totalorder %s360, %s376
    %p378 = scmp.eq.s32.totalorder %s27, 0
    %p379 = por %p377, %p378
    %p380 = scmp.le.s32.totalorder 1, %s21
    %p381 = scmp.lt.s32.totalorder %s21, 3
    %p382 = pnand %p380, %p381
    %p383 = pneg %p382
    // Predicated region
    $region9: #{stitch_forward.1} parent=5 // pred_check
      _
    $region10: #{stitch_forward.1} parent=5 // pred_check_branch
      %385 = sbr.rel (%p382) target = $region12
    $region11: #{stitch_forward.1} parent=5 // pred_region
      %s386 = ssub.s32 %s21, 1
      // Predicated region
      $region13: #{stitch_forward.1} parent=11 // pred_check
        %p387 = pneg %p94
      $region14: #{stitch_forward.1} parent=11 // pred_check_branch
        %389 = sbr.rel (%p387) target = $region16
      $region15: #{stitch_forward.1} parent=11 // pred_region
        _
      $region16: #{stitch_forward.1} parent=11 // pred_fallthru
        _
      // Predicated region
      $region17: #{stitch_forward.1} parent=11 // pred_check
        %p390 = pneg %p115
      $region18: #{stitch_forward.1} parent=11 // pred_check_branch
        %392 = sbr.rel (%p390) target = $region20
      $region19: #{stitch_forward.1} parent=11 // pred_region
        _
      $region20: #{stitch_forward.1} parent=11 // pred_fallthru
        _
      // Predicated region
      $region21: #{stitch_forward.1} parent=11 // pred_check
        %p393 = pneg %p136
      $region22: #{stitch_forward.1} parent=11 // pred_check_branch
        %395 = sbr.rel (%p393) target = $region24
      $region23: #{stitch_forward.1} parent=11 // pred_region
        _
      $region24: #{stitch_forward.1} parent=11 // pred_fallthru
        _
      // Predicated region
      $region25: #{stitch_forward.1} parent=11 // pred_check
        %p396 = pneg %p157
      $region26: #{stitch_forward.1} parent=11 // pred_check_branch
        %398 = sbr.rel (%p396) target = $region28
      $region27: #{stitch_forward.1} parent=11 // pred_region
        _
      $region28: #{stitch_forward.1} parent=11 // pred_fallthru
        _
      // Predicated region
      $region29: #{stitch_forward.1} parent=11 // pred_check
        %p399 = pneg %p178
      $region30: #{stitch_forward.1} parent=11 // pred_check_branch
        %401 = sbr.rel (%p399) target = $region32
      $region31: #{stitch_forward.1} parent=11 // pred_region
        _
      $region32: #{stitch_forward.1} parent=11 // pred_fallthru
        _
      // Predicated region
      $region33: #{stitch_forward.1} parent=11 // pred_check
        %p402 = pneg %p199
      $region34: #{stitch_forward.1} parent=11 // pred_check_branch
        %404 = sbr.rel (%p402) target = $region36
      $region35: #{stitch_forward.1} parent=11 // pred_region
        _
      $region36: #{stitch_forward.1} parent=11 // pred_fallthru
        _
      // Predicated region
      $region37: #{stitch_forward.1} parent=11 // pred_check
        %p405 = pneg %p220
      $region38: #{stitch_forward.1} parent=11 // pred_check_branch
        %407 = sbr.rel (%p405) target = $region40
      $region39: #{stitch_forward.1} parent=11 // pred_region
        _
      $region40: #{stitch_forward.1} parent=11 // pred_fallthru
        _
      // Predicated region
      $region41: #{stitch_forward.1} parent=11 // pred_check
        %p408 = pneg %p241
      $region42: #{stitch_forward.1} parent=11 // pred_check_branch
        %410 = sbr.rel (%p408) target = $region44
      $region43: #{stitch_forward.1} parent=11 // pred_region
        _
      $region44: #{stitch_forward.1} parent=11 // pred_fallthru
        _
      // Predicated region
      $region45: #{stitch_forward.1} parent=11 // pred_check
        %p411 = pneg %p262
      $region46: #{stitch_forward.1} parent=11 // pred_check_branch
        %413 = sbr.rel (%p411) target = $region48
      $region47: #{stitch_forward.1} parent=11 // pred_region
        _
      $region48: #{stitch_forward.1} parent=11 // pred_fallthru
        _
      // Predicated region
      $region49: #{stitch_forward.1} parent=11 // pred_check
        %p414 = pneg %p283
      $region50: #{stitch_forward.1} parent=11 // pred_check_branch
        %416 = sbr.rel (%p414) target = $region52
      $region51: #{stitch_forward.1} parent=11 // pred_region
        _
      $region52: #{stitch_forward.1} parent=11 // pred_fallthru
        _
      // Predicated region
      $region53: #{stitch_forward.1} parent=11 // pred_check
        %p417 = pneg %p304
      $region54: #{stitch_forward.1} parent=11 // pred_check_branch
        %419 = sbr.rel (%p417) target = $region56
      $region55: #{stitch_forward.1} parent=11 // pred_region
        _
      $region56: #{stitch_forward.1} parent=11 // pred_fallthru
        _
      // Predicated region
      $region57: #{stitch_forward.1} parent=11 // pred_check
        %p420 = pneg %p325
      $region58: #{stitch_forward.1} parent=11 // pred_check_branch
        %422 = sbr.rel (%p420) target = $region60
      $region59: #{stitch_forward.1} parent=11 // pred_region
        _
      $region60: #{stitch_forward.1} parent=11 // pred_fallthru
        _
      // Predicated region
      $region61: #{stitch_forward.1} parent=11 // pred_check
        %p423 = pneg %p346
      $region62: #{stitch_forward.1} parent=11 // pred_check_branch
        %425 = sbr.rel (%p423) target = $region64
      $region63: #{stitch_forward.1} parent=11 // pred_region
        _
      $region64: #{stitch_forward.1} parent=11 // pred_fallthru
        _
    $region12: #{stitch_forward.1} parent=5 // pred_fallthru
      _
    %p426 = scmp.lt.s32.totalorder %s21, 2
    // Predicated region
    $region65: #{stitch_forward.1} parent=5 // pred_check
      %p427 = pneg %p426
    $region66: #{stitch_forward.1} parent=5 // pred_check_branch
      %429 = sbr.rel (%p427) target = $region68
    $region67: #{stitch_forward.1} parent=5 // pred_region
      // Predicated region
      $region69: #{stitch_forward.1} parent=67 // pred_check
        %p430 = pneg %p41
      $region70: #{stitch_forward.1} parent=67 // pred_check_branch
        %432 = sbr.rel (%p430) target = $region72
      $region71: #{stitch_forward.1} parent=67 // pred_region
        %p433 = scmp.lt.s32.totalorder %s21, 1
        %s434 = scalar_select %p433, %s21, 1
        %s435 = smul.addr %s434, 8
        %s436 = scalar_lea.vmem %s0, %s435
      $region72: #{stitch_forward.1} parent=67 // pred_fallthru
        _
      // Predicated region
      $region73: #{stitch_forward.1} parent=67 // pred_check
        %p437 = pneg %p67
      $region74: #{stitch_forward.1} parent=67 // pred_check_branch
        %439 = sbr.rel (%p437) target = $region76
      $region75: #{stitch_forward.1} parent=67 // pred_region
        %p440 = scmp.lt.s32.totalorder %s21, 1
        %s441 = scalar_select %p440, %s21, 1
        %s442 = smul.addr %s441, 4
        %s443 = scalar_lea.vmem %s1, %s442
      $region76: #{stitch_forward.1} parent=67 // pred_fallthru
        _
    $region68: #{stitch_forward.1} parent=5 // pred_fallthru
      _
    %p444 = scmp.le.s32.totalorder 1, %s21
    %p445 = scmp.lt.s32.totalorder %s21, 3
    %p446 = pnand %p444, %p445
    %p447 = pneg %p446
    // Predicated region
    $region77: #{stitch_forward.1} parent=5 // pred_check
      _
    $region78: #{stitch_forward.1} parent=5 // pred_check_branch
      %449 = sbr.rel (%p446) target = $region80
    $region79: #{stitch_forward.1} parent=5 // pred_region
      %s450 = ssub.s32 %s21, 1
      %p451 = scmp.lt.s32.totalorder %s26, 1
      %s452 = scalar_select %p451, %s26, 1
      %s453 = smul.addr %s452, 8
      %s454 = scalar_lea.vmem %s0, %s453
      %p455 = pneg %p47
      %p456 = pneg %p44
      %p457 = scmp.lt.s32.totalorder %s26, 1
      %s458 = scalar_select %p457, %s26, 1
      %s459 = smul.addr %s458, 4
      %s460 = scalar_lea.vmem %s1, %s459
      %p461 = pneg %p73
      %p462 = pneg %p70
      %p463 = pneg %p94
      %p464 = pneg %p91
      %p465 = pneg %p115
      %p466 = pneg %p112
      %p467 = pneg %p136
      %p468 = pneg %p133
      %p469 = pneg %p157
      %p470 = pneg %p154
      %p471 = pneg %p178
      %p472 = pneg %p175
      %p473 = pneg %p199
      %p474 = pneg %p196
      %p475 = pneg %p220
      %p476 = pneg %p217
      %p477 = pneg %p241
      %p478 = pneg %p238
      %p479 = pneg %p262
      %p480 = pneg %p259
      %p481 = pneg %p283
      %p482 = pneg %p280
      %p483 = pneg %p304
      %p484 = pneg %p301
      %p485 = pneg %p325
      %p486 = pneg %p322
      %p487 = pneg %p346
      %p488 = pneg %p343
      %p489 = pneg %p372
      %p490 = pneg %p369
      %p491 = scmp.lt.s32.totalorder %s26, 1
      %s492 = scalar_select %p491, %s26, 1
      %s493 = smul.addr %s492, 8
      %s494 = scalar_lea.vmem %s15, %s493
      %p495 = scmp.lt.s32.totalorder %s26, 1
      %s496 = scalar_select %p495, %s26, 1
      %s497 = smul.addr %s496, 8
      %s498 = scalar_lea.vmem %s0, %s497
      %p499 = scmp.lt.s32.totalorder %s26, 1
      %s500 = scalar_select %p499, %s26, 1
      %s501 = smul.addr %s500, 4
      %s502 = scalar_lea.vmem %s1, %s501
      %p503 = scmp.lt.s32.totalorder %s26, 1
      %s504 = scalar_select %p503, %s26, 1
      %s505 = smul.addr %s504, 8
      %s506 = scalar_lea.vmem %s15, %s505
      %v508 = vld [vmem:[%s2] sm:$0xf]
      %v509 = vld [vmem:[%s2 + $0x4] sm:$0xf]
      %v510 = vld [vmem:[%s2 + $0x8] sm:$0xf]
      %v511 = vld [vmem:[%s2 + $0xc] sm:$0xf]
      %v512 = vld [vmem:[%s498] sm:$0xff]
      %v513 = vld [vmem:[%s502] sm:$0xf]
      %v514 = vld [vmem:[%s3] sm:$0xf]
      %v515 = vld [vmem:[%s3 + $0x4] sm:$0xf]
      %v516 = vld [vmem:[%s3 + $0x8] sm:$0xf]
      %v517 = vld [vmem:[%s3 + $0xc] sm:$0xf]
      %v522 = vunpack.c.l.b16 %v508
      %v523 = vunpack.c.l.b16 %v509
      %v524 = vunpack.c.l.b16 %v510
      %v525 = vunpack.c.l.b16 %v511
      %v526 = vpack.c.b16 %v523, %v522
      %v527 = vpack.c.b16 %v525, %v524
      %v532 = vunpack.c.l.b16 %v514
      %v533 = vunpack.c.l.b16 %v515
      %v534 = vunpack.c.l.b16 %v516
      %v535 = vunpack.c.l.b16 %v517
      %v536 = vpack.c.b16 %v533, %v532
      %v537 = vpack.c.b16 %v535, %v534
      %vm540 = vcmask 261120
      %v542 = vsel %vm540, %v526, 0
      %v545 = vsel %vm540, %v527, 0
      %547 = vmatprep.subr.bf16.mxu0 0
      %548 = vmatpush1.bf16.msra.mxu0 %v536
      %549 = vmatprep.subr.bf16.mxu0 0
      %550 = vmatpush1.bf16.msra.mxu0 %v537
      %551 = vmatprep.subr.bf16.mxu0 0
      %552 = vmatpush1.bf16.msra.mxu0 0
      %553 = vmatprep.subr.bf16.mxu0 0
      %554 = vmatpush1.bf16.msra.mxu0 0
      %555 = vmatprep.subr.bf16.mxu0 0
      %556 = vmatpush1.bf16.msra.mxu0 0
      %557 = vmatprep.subr.bf16.mxu0 0
      %558 = vmatpush1.bf16.msra.mxu0 0
      %559 = vmatprep.subr.bf16.mxu0 0
      %560 = vmatpush1.bf16.msra.mxu0 0
      %561 = vmatprep.subr.bf16.mxu0 0
      %562 = vmatpush1.bf16.msra.mxu0 0
      %563 = vmatprep.subr.bf16.mxu0 0
      %564 = vmatpush1.bf16.msra.mxu0 0
      %565 = vmatprep.subr.bf16.mxu0 0
      %566 = vmatpush1.bf16.msra.mxu0 0
      %567 = vmatprep.subr.bf16.mxu0 0
      %568 = vmatpush1.bf16.msra.mxu0 0
      %569 = vmatprep.subr.bf16.mxu0 0
      %570 = vmatpush1.bf16.msra.mxu0 0
      %571 = vmatprep.subr.bf16.mxu0 0
      %572 = vmatpush1.bf16.msra.mxu0 0
      %573 = vmatprep.subr.bf16.mxu0 0
      %574 = vmatpush1.bf16.msra.mxu0 0
      %575 = vmatprep.subr.bf16.mxu0 0
      %576 = vmatpush1.bf16.msra.mxu0 0
      %577 = vmatprep.subr.bf16.mxu0 0
      %578 = vmatpush1.bf16.msra.mxu0 0
      %579 = vmatprep.mubr.bf16.mxu0 0
      %580 = vmatmul.mubr.bf16.gmra.mrb[0].mxu0 %v542
      %v581 = vpop.f32.mrb[0].mxu0
      %v582 = vadd.f32 0.0, %v581
      %v583 = vpop.f32.mrb[0].mxu0
      %v584 = vpop.f32.mrb[0].mxu0
      %v585 = vadd.f32 0.0, %v584
      %v586 = vpop.f32.mrb[0].mxu0
      %587 = vmatprep.mubr.bf16.mxu0 0
      %588 = vmatmul.mubr.bf16.gmra.mrb[0].mxu0 %v545
      %v589 = vpop.f32.mrb[0].mxu0
      %v590 = vadd.f32 0.0, %v589
      %v591 = vpop.f32.mrb[0].mxu0
      %v592 = vpop.f32.mrb[0].mxu0
      %v593 = vadd.f32 0.0, %v592
      %v594 = vpop.f32.mrb[0].mxu0
      %595 = vdwg.mxu0
      %v596 = vpack.c.bf16 %v585, %v582
      %v597 = vpack.c.bf16 %v593, %v590
      %v598 = vld [vmem:[%s4] sm:$0xf]
      %v599 = vld [vmem:[%s4 + $0x4] sm:$0xf]
      %v600 = vld [vmem:[%s4 + $0x8] sm:$0xf]
      %v601 = vld [vmem:[%s4 + $0xc] sm:$0xf]
      %v606 = vunpack.c.l.b16 %v598
      %v607 = vunpack.c.l.b16 %v599
      %v608 = vunpack.c.l.b16 %v600
      %v609 = vunpack.c.l.b16 %v601
      %v610 = vpack.c.b16 %v607, %v606
      %v611 = vpack.c.b16 %v609, %v608
      %614 = vmatprep.subr.bf16.mxu0 0
      %615 = vmatpush1.bf16.msra.mxu0 %v610
      %616 = vmatprep.subr.bf16.mxu0 0
      %617 = vmatpush1.bf16.msra.mxu0 %v611
      %618 = vmatprep.subr.bf16.mxu0 0
      %619 = vmatpush1.bf16.msra.mxu0 0
      %620 = vmatprep.subr.bf16.mxu0 0
      %621 = vmatpush1.bf16.msra.mxu0 0
      %622 = vmatprep.subr.bf16.mxu0 0
      %623 = vmatpush1.bf16.msra.mxu0 0
      %624 = vmatprep.subr.bf16.mxu0 0
      %625 = vmatpush1.bf16.msra.mxu0 0
      %626 = vmatprep.subr.bf16.mxu0 0
      %627 = vmatpush1.bf16.msra.mxu0 0
      %628 = vmatprep.subr.bf16.mxu0 0
      %629 = vmatpush1.bf16.msra.mxu0 0
      %630 = vmatprep.subr.bf16.mxu0 0
      %631 = vmatpush1.bf16.msra.mxu0 0
      %632 = vmatprep.subr.bf16.mxu0 0
      %633 = vmatpush1.bf16.msra.mxu0 0
      %634 = vmatprep.subr.bf16.mxu0 0
      %635 = vmatpush1.bf16.msra.mxu0 0
      %636 = vmatprep.subr.bf16.mxu0 0
      %637 = vmatpush1.bf16.msra.mxu0 0
      %638 = vmatprep.subr.bf16.mxu0 0
      %639 = vmatpush1.bf16.msra.mxu0 0
      %640 = vmatprep.subr.bf16.mxu0 0
      %641 = vmatpush1.bf16.msra.mxu0 0
      %642 = vmatprep.subr.bf16.mxu0 0
      %643 = vmatpush1.bf16.msra.mxu0 0
      %644 = vmatprep.subr.bf16.mxu0 0
      %645 = vmatpush1.bf16.msra.mxu0 0
      %646 = vmatprep.mubr.bf16.mxu0 0
      %647 = vmatmul.mubr.bf16.gmra.mrb[0].mxu0 %v542
      %v648 = vpop.f32.mrb[0].mxu0
      %v649 = vadd.f32 0.0, %v648
      %v650 = vpop.f32.mrb[0].mxu0
      %v651 = vpop.f32.mrb[0].mxu0
      %v652 = vadd.f32 0.0, %v651
      %v653 = vpop.f32.mrb[0].mxu0
      %654 = vmatprep.mubr.bf16.mxu0 0
      %655 = vmatmul.mubr.bf16.gmra.mrb[0].mxu0 %v545
      %v656 = vpop.f32.mrb[0].mxu0
      %v657 = vadd.f32 0.0, %v656
      %v658 = vpop.f32.mrb[0].mxu0
      %v659 = vpop.f32.mrb[0].mxu0
      %v660 = vadd.f32 0.0, %v659
      %v661 = vpop.f32.mrb[0].mxu0
      %662 = vdwg.mxu0
      %v663 = vpack.c.bf16 %v652, %v649
      %v664 = vpack.c.bf16 %v660, %v657
      %v665 = vlaneseq
      %v666 = vand.u32 %v665, 127
      %v667 = vld [vmem:[%s5] sm:$0x7]
      %v668 = vld [vmem:[%s6] sm:$0x1]
      %v669 = vld [vmem:[%s7] sm:$0xf]
      %v670 = vld [vmem:[%s7 + $0x4] sm:$0xf]
      %v671 = vld [vmem:[%s7 + $0x8] sm:$0xf]
      %v672 = vld [vmem:[%s7 + $0xc] sm:$0xf]
      %673 = vset.pattern.permute.xlu0 0
      %674 = vperm.xlu0 %673, %v512
      %v675 = vpop.permute.xlu0 %674
      %vm676 = vcmp.eq.s32.totalorder %v675, %v666
      %v677 = vsel %vm676, 1, 0
      %v678 = vcvt.s32.f32 %v677
      %v679 = vpack.c.bf16 %v678, %v678
      %680 = vset.pattern.permute.xlu0 2
      %681 = vperm.xlu0 %680, %v512
      %v682 = vpop.permute.xlu0 %681
      %vm683 = vcmp.eq.s32.totalorder %v682, %v666
      %v684 = vsel %vm683, 1, 0
      %v685 = vcvt.s32.f32 %v684
      %v686 = vpack.c.bf16 %v685, %v685
      %v688 = vsel %vm540, %v686, 0
      %690 = vmatprep.subr.bf16.mxu0 0
      %691 = vmatpush1.bf16.msra.mxu0 %v663
      %692 = vmatprep.subr.bf16.mxu0 0
      %693 = vmatpush1.bf16.msra.mxu0 %v664
      %694 = vmatprep.subr.bf16.mxu0 0
      %695 = vmatpush1.bf16.msra.mxu0 0
      %696 = vmatprep.subr.bf16.mxu0 0
      %697 = vmatpush1.bf16.msra.mxu0 0
      %698 = vmatprep.subr.bf16.mxu0 0
      %699 = vmatpush1.bf16.msra.mxu0 0
      %700 = vmatprep.subr.bf16.mxu0 0
      %701 = vmatpush1.bf16.msra.mxu0 0
      %702 = vmatprep.subr.bf16.mxu0 0
      %703 = vmatpush1.bf16.msra.mxu0 0
      %704 = vmatprep.subr.bf16.mxu0 0
      %705 = vmatpush1.bf16.msra.mxu0 0
      %706 = vmatprep.subr.bf16.mxu0 0
      %707 = vmatpush1.bf16.msra.mxu0 0
      %708 = vmatprep.subr.bf16.mxu0 0
      %709 = vmatpush1.bf16.msra.mxu0 0
      %710 = vmatprep.subr.bf16.mxu0 0
      %711 = vmatpush1.bf16.msra.mxu0 0
      %712 = vmatprep.subr.bf16.mxu0 0
      %713 = vmatpush1.bf16.msra.mxu0 0
      %714 = vmatprep.subr.bf16.mxu0 0
      %715 = vmatpush1.bf16.msra.mxu0 0
      %716 = vmatprep.subr.bf16.mxu0 0
      %717 = vmatpush1.bf16.msra.mxu0 0
      %718 = vmatprep.subr.bf16.mxu0 0
      %719 = vmatpush1.bf16.msra.mxu0 0
      %720 = vmatprep.subr.bf16.mxu0 0
      %721 = vmatpush1.bf16.msra.mxu0 0
      %722 = vmatprep.mubr.bf16.mxu0 0
      %723 = vmatmul.mubr.bf16.gmra.mrb[0].mxu0 %v688
      %v724 = vpop.f32.mrb[0].mxu0
      %v725 = vadd.f32 0.0, %v724
      %v726 = vpop.f32.mrb[0].mxu0
      %v727 = vpop.f32.mrb[0].mxu0
      %v728 = vpop.f32.mrb[0].mxu0
      %729 = vdwg.mxu0
      %v731 = vsel %vm540, %v679, 0
      %733 = vmatprep.subr.bf16.mxu0 0
      %734 = vmatpush1.bf16.msra.mxu0 %v596
      %735 = vmatprep.subr.bf16.mxu0 0
      %736 = vmatpush1.bf16.msra.mxu0 %v597
      %737 = vmatprep.subr.bf16.mxu0 0
      %738 = vmatpush1.bf16.msra.mxu0 0
      %739 = vmatprep.subr.bf16.mxu0 0
      %740 = vmatpush1.bf16.msra.mxu0 0
      %741 = vmatprep.subr.bf16.mxu0 0
      %742 = vmatpush1.bf16.msra.mxu0 0
      %743 = vmatprep.subr.bf16.mxu0 0
      %744 = vmatpush1.bf16.msra.mxu0 0
      %745 = vmatprep.subr.bf16.mxu0 0
      %746 = vmatpush1.bf16.msra.mxu0 0
      %747 = vmatprep.subr.bf16.mxu0 0
      %748 = vmatpush1.bf16.msra.mxu0 0
      %749 = vmatprep.subr.bf16.mxu0 0
      %750 = vmatpush1.bf16.msra.mxu0 0
      %751 = vmatprep.subr.bf16.mxu0 0
      %752 = vmatpush1.bf16.msra.mxu0 0
      %753 = vmatprep.subr.bf16.mxu0 0
      %754 = vmatpush1.bf16.msra.mxu0 0
      %755 = vmatprep.subr.bf16.mxu0 0
      %756 = vmatpush1.bf16.msra.mxu0 0
      %757 = vmatprep.subr.bf16.mxu0 0
      %758 = vmatpush1.bf16.msra.mxu0 0
      %759 = vmatprep.subr.bf16.mxu0 0
      %760 = vmatpush1.bf16.msra.mxu0 0
      %761 = vmatprep.subr.bf16.mxu0 0
      %762 = vmatpush1.bf16.msra.mxu0 0
      %763 = vmatprep.subr.bf16.mxu0 0
      %764 = vmatpush1.bf16.msra.mxu0 0
      %765 = vmatprep.mubr.bf16.mxu0 0
      %766 = vmatmul.mubr.bf16.gmra.mrb[0].mxu0 %v731
      %v767 = vpop.f32.mrb[0].mxu0
      %v768 = vadd.f32 %v725, %v767
      %v769 = vpop.f32.mrb[0].mxu0
      %v770 = vpop.f32.mrb[0].mxu0
      %v771 = vpop.f32.mrb[0].mxu0
      %772 = vdwg.mxu0
      %vm773 = vcmask 48128
      %v775 = vsel %vm773, %v513, 0
      %vm777 = vcmask 1042432
      %v779 = vsel %vm777, %v667, 0
      %781 = vmatprep.subr.bf16.mxu0 0
      %782 = vmatpush1.bf16.msra.mxu0 %v779
      %783 = vmatprep.subr.bf16.mxu0 0
      %784 = vmatpush1.bf16.msra.mxu0 0
      %785 = vmatprep.subr.bf16.mxu0 0
      %786 = vmatpush1.bf16.msra.mxu0 0
      %787 = vmatprep.subr.bf16.mxu0 0
      %788 = vmatpush1.bf16.msra.mxu0 0
      %789 = vmatprep.subr.bf16.mxu0 0
      %790 = vmatpush1.bf16.msra.mxu0 0
      %791 = vmatprep.subr.bf16.mxu0 0
      %792 = vmatpush1.bf16.msra.mxu0 0
      %793 = vmatprep.subr.bf16.mxu0 0
      %794 = vmatpush1.bf16.msra.mxu0 0
      %795 = vmatprep.subr.bf16.mxu0 0
      %796 = vmatpush1.bf16.msra.mxu0 0
      %797 = vmatprep.subr.bf16.mxu0 0
      %798 = vmatpush1.bf16.msra.mxu0 0
      %799 = vmatprep.subr.bf16.mxu0 0
      %800 = vmatpush1.bf16.msra.mxu0 0
      %801 = vmatprep.subr.bf16.mxu0 0
      %802 = vmatpush1.bf16.msra.mxu0 0
      %803 = vmatprep.subr.bf16.mxu0 0
      %804 = vmatpush1.bf16.msra.mxu0 0
      %805 = vmatprep.subr.bf16.mxu0 0
      %806 = vmatpush1.bf16.msra.mxu0 0
      %807 = vmatprep.subr.bf16.mxu0 0
      %808 = vmatpush1.bf16.msra.mxu0 0
      %809 = vmatprep.subr.bf16.mxu0 0
      %810 = vmatpush1.bf16.msra.mxu0 0
      %811 = vmatprep.subr.bf16.mxu0 0
      %812 = vmatpush1.bf16.msra.mxu0 0
      %813 = vmatprep.mubr.bf16.mxu0 0
      %814 = vmatmul.mubr.bf16.gmra.mrb[0].mxu0 %v775
      %v815 = vpop.f32.mrb[0].mxu0
      %v816 = vadd.f32 0.0, %v815
      %v817 = vpop.f32.mrb[0].mxu0
      %v818 = vpop.f32.mrb[0].mxu0
      %v819 = vpop.f32.mrb[0].mxu0
      %820 = vdwg.mxu0
      %v821 = vadd.f32 %v768, %v816
      %v823 = vlaneseq
      %v824 = vshrl.u32 %v823, 7
      %v825 = vsub.s32 0, %v824
      %v826 = vrot.slane %v668, %v825
      %v828 = vadd.f32 %v821, %v826
      %v829 = vmax.f32 %v828, 0.0
      %v830 = vpack.c.bf16 %v829, %v829
      %831 = vset.pattern.permute.xlu0 1
      %832 = vperm.xlu0 %831, %v512
      %v833 = vpop.permute.xlu0 %832
      %vm834 = vcmp.eq.s32.totalorder %v833, %v666
      %v835 = vsel %vm834, 1, 0
      %v836 = vcvt.s32.f32 %v835
      %v837 = vpack.c.bf16 %v836, %v836
      %838 = vset.pattern.permute.xlu0 3
      %839 = vperm.xlu0 %838, %v512
      %v840 = vpop.permute.xlu0 %839
      %vm841 = vcmp.eq.s32.totalorder %v840, %v666
      %v842 = vsel %vm841, 1, 0
      %v843 = vcvt.s32.f32 %v842
      %v844 = vpack.c.bf16 %v843, %v843
      %v846 = vsel %vm540, %v844, 0
      %848 = vmatprep.subr.bf16.mxu0 0
      %849 = vmatpush1.bf16.msra.mxu0 %v663
      %850 = vmatprep.subr.bf16.mxu0 0
      %851 = vmatpush1.bf16.msra.mxu0 %v664
      %852 = vmatprep.subr.bf16.mxu0 0
      %853 = vmatpush1.bf16.msra.mxu0 0
      %854 = vmatprep.subr.bf16.mxu0 0
      %855 = vmatpush1.bf16.msra.mxu0 0
      %856 = vmatprep.subr.bf16.mxu0 0
      %857 = vmatpush1.bf16.msra.mxu0 0
      %858 = vmatprep.subr.bf16.mxu0 0
      %859 = vmatpush1.bf16.msra.mxu0 0
      %860 = vmatprep.subr.bf16.mxu0 0
      %861 = vmatpush1.bf16.msra.mxu0 0
      %862 = vmatprep.subr.bf16.mxu0 0
      %863 = vmatpush1.bf16.msra.mxu0 0
      %864 = vmatprep.subr.bf16.mxu0 0
      %865 = vmatpush1.bf16.msra.mxu0 0
      %866 = vmatprep.subr.bf16.mxu0 0
      %867 = vmatpush1.bf16.msra.mxu0 0
      %868 = vmatprep.subr.bf16.mxu0 0
      %869 = vmatpush1.bf16.msra.mxu0 0
      %870 = vmatprep.subr.bf16.mxu0 0
      %871 = vmatpush1.bf16.msra.mxu0 0
      %872 = vmatprep.subr.bf16.mxu0 0
      %873 = vmatpush1.bf16.msra.mxu0 0
      %874 = vmatprep.subr.bf16.mxu0 0
      %875 = vmatpush1.bf16.msra.mxu0 0
      %876 = vmatprep.subr.bf16.mxu0 0
      %877 = vmatpush1.bf16.msra.mxu0 0
      %878 = vmatprep.subr.bf16.mxu0 0
      %879 = vmatpush1.bf16.msra.mxu0 0
      %880 = vmatprep.mubr.bf16.mxu0 0
      %881 = vmatmul.mubr.bf16.gmra.mrb[0].mxu0 %v846
      %v882 = vpop.f32.mrb[0].mxu0
      %v883 = vadd.f32 0.0, %v882
      %v884 = vpop.f32.mrb[0].mxu0
      %v885 = vpop.f32.mrb[0].mxu0
      %v886 = vpop.f32.mrb[0].mxu0
      %887 = vdwg.mxu0
      %v889 = vsel %vm540, %v837, 0
      %891 = vmatprep.subr.bf16.mxu0 0
      %892 = vmatpush1.bf16.msra.mxu0 %v596
      %893 = vmatprep.subr.bf16.mxu0 0
      %894 = vmatpush1.bf16.msra.mxu0 %v597
      %895 = vmatprep.subr.bf16.mxu0 0
      %896 = vmatpush1.bf16.msra.mxu0 0
      %897 = vmatprep.subr.bf16.mxu0 0
      %898 = vmatpush1.bf16.msra.mxu0 0
      %899 = vmatprep.subr.bf16.mxu0 0
      %900 = vmatpush1.bf16.msra.mxu0 0
      %901 = vmatprep.subr.bf16.mxu0 0
      %902 = vmatpush1.bf16.msra.mxu0 0
      %903 = vmatprep.subr.bf16.mxu0 0
      %904 = vmatpush1.bf16.msra.mxu0 0
      %905 = vmatprep.subr.bf16.mxu0 0
      %906 = vmatpush1.bf16.msra.mxu0 0
      %907 = vmatprep.subr.bf16.mxu0 0
      %908 = vmatpush1.bf16.msra.mxu0 0
      %909 = vmatprep.subr.bf16.mxu0 0
      %910 = vmatpush1.bf16.msra.mxu0 0
      %911 = vmatprep.subr.bf16.mxu0 0
      %912 = vmatpush1.bf16.msra.mxu0 0
      %913 = vmatprep.subr.bf16.mxu0 0
      %914 = vmatpush1.bf16.msra.mxu0 0
      %915 = vmatprep.subr.bf16.mxu0 0
      %916 = vmatpush1.bf16.msra.mxu0 0
      %917 = vmatprep.subr.bf16.mxu0 0
      %918 = vmatpush1.bf16.msra.mxu0 0
      %919 = vmatprep.subr.bf16.mxu0 0
      %920 = vmatpush1.bf16.msra.mxu0 0
      %921 = vmatprep.subr.bf16.mxu0 0
      %922 = vmatpush1.bf16.msra.mxu0 0
      %923 = vmatprep.mubr.bf16.mxu0 0
      %924 = vmatmul.mubr.bf16.gmra.mrb[0].mxu0 %v889
      %v925 = vpop.f32.mrb[0].mxu0
      %v926 = vadd.f32 %v883, %v925
      %v927 = vpop.f32.mrb[0].mxu0
      %v928 = vpop.f32.mrb[0].mxu0
      %v929 = vpop.f32.mrb[0].mxu0
      %930 = vdwg.mxu0
      %v932 = vunpack.c.l.b16 %v513
      %v933 = vpack.c.b16 %v932, %v932
      %934 = vrot.lane.b32.xlu0 %v933, 122
      %v935 = vpop.permute.xlu0 %934
      %v937 = vsel %vm773, %v935, 0
      %939 = vmatprep.subr.bf16.mxu0 0
      %940 = vmatpush1.bf16.msra.mxu0 %v779
      %941 = vmatprep.subr.bf16.mxu0 0
      %942 = vmatpush1.bf16.msra.mxu0 0
      %943 = vmatprep.subr.bf16.mxu0 0
      %944 = vmatpush1.bf16.msra.mxu0 0
      %945 = vmatprep.subr.bf16.mxu0 0
      %946 = vmatpush1.bf16.msra.mxu0 0
      %947 = vmatprep.subr.bf16.mxu0 0
      %948 = vmatpush1.bf16.msra.mxu0 0
      %949 = vmatprep.subr.bf16.mxu0 0
      %950 = vmatpush1.bf16.msra.mxu0 0
      %951 = vmatprep.subr.bf16.mxu0 0
      %952 = vmatpush1.bf16.msra.mxu0 0
      %953 = vmatprep.subr.bf16.mxu0 0
      %954 = vmatpush1.bf16.msra.mxu0 0
      %955 = vmatprep.subr.bf16.mxu0 0
      %956 = vmatpush1.bf16.msra.mxu0 0
      %957 = vmatprep.subr.bf16.mxu0 0
      %958 = vmatpush1.bf16.msra.mxu0 0
      %959 = vmatprep.subr.bf16.mxu0 0
      %960 = vmatpush1.bf16.msra.mxu0 0
      %961 = vmatprep.subr.bf16.mxu0 0
      %962 = vmatpush1.bf16.msra.mxu0 0
      %963 = vmatprep.subr.bf16.mxu0 0
      %964 = vmatpush1.bf16.msra.mxu0 0
      %965 = vmatprep.subr.bf16.mxu0 0
      %966 = vmatpush1.bf16.msra.mxu0 0
      %967 = vmatprep.subr.bf16.mxu0 0
      %968 = vmatpush1.bf16.msra.mxu0 0
      %969 = vmatprep.subr.bf16.mxu0 0
      %970 = vmatpush1.bf16.msra.mxu0 0
      %971 = vmatprep.mubr.bf16.mxu0 0
      %972 = vmatmul.mubr.bf16.gmra.mrb[0].mxu0 %v937
      %v973 = vpop.f32.mrb[0].mxu0
      %v974 = vadd.f32 0.0, %v973
      %v975 = vpop.f32.mrb[0].mxu0
      %v976 = vpop.f32.mrb[0].mxu0
      %v977 = vpop.f32.mrb[0].mxu0
      %978 = vdwg.mxu0
      %v979 = vadd.f32 %v926, %v974
      %v980 = vadd.f32 %v979, %v826
      %v981 = vmax.f32 %v980, 0.0
      %v982 = vpack.c.bf16 %v981, %v981
      %v985 = vunpack.c.l.b16 %v671
      %v986 = vunpack.c.l.b16 %v672
      %v987 = vpack.c.b16 %v986, %v985
      %vm989 = vcmask 130048
      %v991 = vsel %vm989, %v982, 0
      %993 = vmatprep.subr.bf16.mxu0 0
      %994 = vmatpush1.bf16.msra.mxu0 %v987
      %995 = vmatprep.subr.bf16.mxu0 0
      %996 = vmatpush1.bf16.msra.mxu0 0
      %997 = vmatprep.subr.bf16.mxu0 0
      %998 = vmatpush1.bf16.msra.mxu0 0
      %999 = vmatprep.subr.bf16.mxu0 0
      %1000 = vmatpush1.bf16.msra.mxu0 0
      %1001 = vmatprep.subr.bf16.mxu0 0
      %1002 = vmatpush1.bf16.msra.mxu0 0
      %1003 = vmatprep.subr.bf16.mxu0 0
      %1004 = vmatpush1.bf16.msra.mxu0 0
      %1005 = vmatprep.subr.bf16.mxu0 0
      %1006 = vmatpush1.bf16.msra.mxu0 0
      %1007 = vmatprep.subr.bf16.mxu0 0
      %1008 = vmatpush1.bf16.msra.mxu0 0
      %1009 = vmatprep.subr.bf16.mxu0 0
      %1010 = vmatpush1.bf16.msra.mxu0 0
      %1011 = vmatprep.subr.bf16.mxu0 0
      %1012 = vmatpush1.bf16.msra.mxu0 0
      %1013 = vmatprep.subr.bf16.mxu0 0
      %1014 = vmatpush1.bf16.msra.mxu0 0
      %1015 = vmatprep.subr.bf16.mxu0 0
      %1016 = vmatpush1.bf16.msra.mxu0 0
      %1017 = vmatprep.subr.bf16.mxu0 0
      %1018 = vmatpush1.bf16.msra.mxu0 0
      %1019 = vmatprep.subr.bf16.mxu0 0
      %1020 = vmatpush1.bf16.msra.mxu0 0
      %1021 = vmatprep.subr.bf16.mxu0 0
      %1022 = vmatpush1.bf16.msra.mxu0 0
      %1023 = vmatprep.subr.bf16.mxu0 0
      %1024 = vmatpush1.bf16.msra.mxu0 0
      %1025 = vmatprep.mubr.bf16.mxu0 0
      %1026 = vmatmul.mubr.bf16.gmra.mrb[0].mxu0 %v991
      %v1027 = vpop.f32.mrb[0].mxu0
      %v1028 = vadd.f32 0.0, %v1027
      %v1029 = vpop.f32.mrb[0].mxu0
      %v1030 = vpop.f32.mrb[0].mxu0
      %v1031 = vpop.f32.mrb[0].mxu0
      %1032 = vdwg.mxu0
      %v1035 = vunpack.c.l.b16 %v669
      %v1036 = vunpack.c.l.b16 %v670
      %v1037 = vpack.c.b16 %v1036, %v1035
      %v1040 = vsel %vm989, %v830, 0
      %1042 = vmatprep.subr.bf16.mxu0 0
      %1043 = vmatpush1.bf16.msra.mxu0 %v1037
      %1044 = vmatprep.subr.bf16.mxu0 0
      %1045 = vmatpush1.bf16.msra.mxu0 0
      %1046 = vmatprep.subr.bf16.mxu0 0
      %1047 = vmatpush1.bf16.msra.mxu0 0
      %1048 = vmatprep.subr.bf16.mxu0 0
      %1049 = vmatpush1.bf16.msra.mxu0 0
      %1050 = vmatprep.subr.bf16.mxu0 0
      %1051 = vmatpush1.bf16.msra.mxu0 0
      %1052 = vmatprep.subr.bf16.mxu0 0
      %1053 = vmatpush1.bf16.msra.mxu0 0
      %1054 = vmatprep.subr.bf16.mxu0 0
      %1055 = vmatpush1.bf16.msra.mxu0 0
      %1056 = vmatprep.subr.bf16.mxu0 0
      %1057 = vmatpush1.bf16.msra.mxu0 0
      %1058 = vmatprep.subr.bf16.mxu0 0
      %1059 = vmatpush1.bf16.msra.mxu0 0
      %1060 = vmatprep.subr.bf16.mxu0 0
      %1061 = vmatpush1.bf16.msra.mxu0 0
      %1062 = vmatprep.subr.bf16.mxu0 0
      %1063 = vmatpush1.bf16.msra.mxu0 0
      %1064 = vmatprep.subr.bf16.mxu0 0
      %1065 = vmatpush1.bf16.msra.mxu0 0
      %1066 = vmatprep.subr.bf16.mxu0 0
      %1067 = vmatpush1.bf16.msra.mxu0 0
      %1068 = vmatprep.subr.bf16.mxu0 0
      %1069 = vmatpush1.bf16.msra.mxu0 0
      %1070 = vmatprep.subr.bf16.mxu0 0
      %1071 = vmatpush1.bf16.msra.mxu0 0
      %1072 = vmatprep.subr.bf16.mxu0 0
      %1073 = vmatpush1.bf16.msra.mxu0 0
      %1074 = vmatprep.mubr.bf16.mxu0 0
      %1075 = vmatmul.mubr.bf16.gmra.mrb[0].mxu0 %v1040
      %v1076 = vpop.f32.mrb[0].mxu0
      %v1077 = vadd.f32 %v1028, %v1076
      %v1078 = vpop.f32.mrb[0].mxu0
      %v1079 = vpop.f32.mrb[0].mxu0
      %v1080 = vpop.f32.mrb[0].mxu0
      %1081 = vdwg.mxu0
      %v1082 = vld [vmem:[%s8] sm:$0x1]
      %v1084 = vlaneseq
      %v1085 = vshrl.u32 %v1084, 7
      %v1086 = vsub.s32 0, %v1085
      %v1087 = vrot.slane %v1082, %v1086
      %v1089 = vadd.f32 %v1077, %v1087
      %v1090 = vmax.f32 %v1089, 0.0
      %v1091 = vpack.c.bf16 %v1090, %v1090
      %v1092 = vld [vmem:[%s9] sm:$0xf]
      %v1093 = vld [vmem:[%s9 + $0x4] sm:$0xf]
      %v1094 = vld [vmem:[%s9 + $0x8] sm:$0xf]
      %v1095 = vld [vmem:[%s9 + $0xc] sm:$0xf]
      %v1096 = vld [vmem:[%s9 + $0x10] sm:$0xf]
      %v1097 = vld [vmem:[%s9 + $0x14] sm:$0xf]
      %v1098 = vld [vmem:[%s9 + $0x18] sm:$0xf]
      %v1099 = vld [vmem:[%s9 + $0x1c] sm:$0xf]
      %v1100 = vld [vmem:[%s9 + $0x20] sm:$0xf]
      %v1101 = vld [vmem:[%s9 + $0x24] sm:$0xf]
      %v1102 = vld [vmem:[%s9 + $0x28] sm:$0xf]
      %v1103 = vld [vmem:[%s9 + $0x2c] sm:$0xf]
      %v1104 = vld [vmem:[%s9 + $0x30] sm:$0xf]
      %v1105 = vld [vmem:[%s9 + $0x34] sm:$0xf]
      %v1106 = vld [vmem:[%s9 + $0x38] sm:$0xf]
      %v1107 = vld [vmem:[%s9 + $0x3c] sm:$0xf]
      %v1108 = vld [vmem:[%s10] sm:$0x1]
      %v1110 = vlaneseq
      %v1111 = vshrl.u32 %v1110, 7
      %v1112 = vsub.s32 0, %v1111
      %v1113 = vrot.slane %v1108, %v1112
      %v1131 = vunpack.c.l.b16 %v1092
      %v1132 = vunpack.c.l.b16 %v1093
      %v1133 = vunpack.c.l.b16 %v1094
      %v1134 = vunpack.c.l.b16 %v1095
      %v1135 = vunpack.c.l.b16 %v1096
      %v1136 = vunpack.c.l.b16 %v1097
      %v1137 = vunpack.c.l.b16 %v1098
      %v1138 = vunpack.c.l.b16 %v1099
      %v1139 = vunpack.c.l.b16 %v1100
      %v1140 = vunpack.c.l.b16 %v1101
      %v1141 = vunpack.c.l.b16 %v1102
      %v1142 = vunpack.c.l.b16 %v1103
      %v1143 = vunpack.c.l.b16 %v1104
      %v1144 = vunpack.c.l.b16 %v1105
      %v1145 = vunpack.c.l.b16 %v1106
      %v1146 = vunpack.c.l.b16 %v1107
      %v1147 = vpack.c.b16 %v1132, %v1131
      %v1148 = vpack.c.b16 %v1134, %v1133
      %v1149 = vpack.c.b16 %v1136, %v1135
      %v1150 = vpack.c.b16 %v1138, %v1137
      %v1151 = vpack.c.b16 %v1140, %v1139
      %v1152 = vpack.c.b16 %v1142, %v1141
      %v1153 = vpack.c.b16 %v1144, %v1143
      %v1154 = vpack.c.b16 %v1146, %v1145
      %1163 = vmatprep.subr.bf16.mxu0 0
      %1164 = vmatpush1.bf16.msra.mxu0 %v1147
      %1165 = vmatprep.subr.bf16.mxu0 0
      %1166 = vmatpush1.bf16.msra.mxu0 %v1148
      %1167 = vmatprep.subr.bf16.mxu0 0
      %1168 = vmatpush1.bf16.msra.mxu0 %v1149
      %1169 = vmatprep.subr.bf16.mxu0 0
      %1170 = vmatpush1.bf16.msra.mxu0 %v1150
      %1171 = vmatprep.subr.bf16.mxu0 0
      %1172 = vmatpush1.bf16.msra.mxu0 %v1151
      %1173 = vmatprep.subr.bf16.mxu0 0
      %1174 = vmatpush1.bf16.msra.mxu0 %v1152
      %1175 = vmatprep.subr.bf16.mxu0 0
      %1176 = vmatpush1.bf16.msra.mxu0 %v1153
      %1177 = vmatprep.subr.bf16.mxu0 0
      %1178 = vmatpush1.bf16.msra.mxu0 %v1154
      %1179 = vmatprep.subr.bf16.mxu0 0
      %1180 = vmatpush1.bf16.msra.mxu0 0
      %1181 = vmatprep.subr.bf16.mxu0 0
      %1182 = vmatpush1.bf16.msra.mxu0 0
      %1183 = vmatprep.subr.bf16.mxu0 0
      %1184 = vmatpush1.bf16.msra.mxu0 0
      %1185 = vmatprep.subr.bf16.mxu0 0
      %1186 = vmatpush1.bf16.msra.mxu0 0
      %1187 = vmatprep.subr.bf16.mxu0 0
      %1188 = vmatpush1.bf16.msra.mxu0 0
      %1189 = vmatprep.subr.bf16.mxu0 0
      %1190 = vmatpush1.bf16.msra.mxu0 0
      %1191 = vmatprep.subr.bf16.mxu0 0
      %1192 = vmatpush1.bf16.msra.mxu0 0
      %1193 = vmatprep.subr.bf16.mxu0 0
      %1194 = vmatpush1.bf16.msra.mxu0 0
      %1195 = vmatprep.mubr.bf16.mxu0 0
      %1196 = vmatmul.mubr.bf16.gmra.mrb[0].mxu0 %v1091
      %v1197 = vpop.f32.mrb[0].mxu0
      %v1198 = vadd.f32 %v1113, %v1197
      %v1199 = vpop.f32.mrb[0].mxu0
      %v1200 = vpop.f32.mrb[0].mxu0
      %v1201 = vpop.f32.mrb[0].mxu0
      %1202 = vdwg.mxu0
      %v1203 = vmax.f32 %v1198, 0.0
      %v1204 = vpack.c.bf16 %v1203, %v1203
      %v1205 = vld [vmem:[%s11] sm:$0xf]
      %v1206 = vld [vmem:[%s11 + $0x4] sm:$0xf]
      %v1207 = vld [vmem:[%s11 + $0x8] sm:$0xf]
      %v1208 = vld [vmem:[%s11 + $0xc] sm:$0xf]
      %v1209 = vld [vmem:[%s11 + $0x10] sm:$0xf]
      %v1210 = vld [vmem:[%s11 + $0x14] sm:$0xf]
      %v1211 = vld [vmem:[%s11 + $0x18] sm:$0xf]
      %v1212 = vld [vmem:[%s11 + $0x1c] sm:$0xf]
      %v1213 = vld [vmem:[%s12] sm:$0x1]
      %v1215 = vlaneseq
      %v1216 = vshrl.u32 %v1215, 7
      %v1217 = vsub.s32 0, %v1216
      %v1218 = vrot.slane %v1213, %v1217
      %v1228 = vunpack.c.l.b16 %v1205
      %v1229 = vunpack.c.l.b16 %v1206
      %v1230 = vunpack.c.l.b16 %v1207
      %v1231 = vunpack.c.l.b16 %v1208
      %v1232 = vunpack.c.l.b16 %v1209
      %v1233 = vunpack.c.l.b16 %v1210
      %v1234 = vunpack.c.l.b16 %v1211
      %v1235 = vunpack.c.l.b16 %v1212
      %v1236 = vpack.c.b16 %v1229, %v1228
      %v1237 = vpack.c.b16 %v1231, %v1230
      %v1238 = vpack.c.b16 %v1233, %v1232
      %v1239 = vpack.c.b16 %v1235, %v1234
      %vm1244 = vcmask 523264
      %v1246 = vsel %vm1244, %v1204, 0
      %1248 = vmatprep.subr.bf16.mxu0 0
      %1249 = vmatpush1.bf16.msra.mxu0 %v1236
      %1250 = vmatprep.subr.bf16.mxu0 0
      %1251 = vmatpush1.bf16.msra.mxu0 %v1237
      %1252 = vmatprep.subr.bf16.mxu0 0
      %1253 = vmatpush1.bf16.msra.mxu0 %v1238
      %1254 = vmatprep.subr.bf16.mxu0 0
      %1255 = vmatpush1.bf16.msra.mxu0 %v1239
      %1256 = vmatprep.subr.bf16.mxu0 0
      %1257 = vmatpush1.bf16.msra.mxu0 0
      %1258 = vmatprep.subr.bf16.mxu0 0
      %1259 = vmatpush1.bf16.msra.mxu0 0
      %1260 = vmatprep.subr.bf16.mxu0 0
      %1261 = vmatpush1.bf16.msra.mxu0 0
      %1262 = vmatprep.subr.bf16.mxu0 0
      %1263 = vmatpush1.bf16.msra.mxu0 0
      %1264 = vmatprep.subr.bf16.mxu0 0
      %1265 = vmatpush1.bf16.msra.mxu0 0
      %1266 = vmatprep.subr.bf16.mxu0 0
      %1267 = vmatpush1.bf16.msra.mxu0 0
      %1268 = vmatprep.subr.bf16.mxu0 0
      %1269 = vmatpush1.bf16.msra.mxu0 0
      %1270 = vmatprep.subr.bf16.mxu0 0
      %1271 = vmatpush1.bf16.msra.mxu0 0
      %1272 = vmatprep.subr.bf16.mxu0 0
      %1273 = vmatpush1.bf16.msra.mxu0 0
      %1274 = vmatprep.subr.bf16.mxu0 0
      %1275 = vmatpush1.bf16.msra.mxu0 0
      %1276 = vmatprep.subr.bf16.mxu0 0
      %1277 = vmatpush1.bf16.msra.mxu0 0
      %1278 = vmatprep.subr.bf16.mxu0 0
      %1279 = vmatpush1.bf16.msra.mxu0 0
      %1280 = vmatprep.mubr.bf16.mxu0 0
      %1281 = vmatmul.mubr.bf16.gmra.mrb[0].mxu0 %v1246
      %v1282 = vpop.f32.mrb[0].mxu0
      %v1283 = vadd.f32 %v1218, %v1282
      %v1284 = vpop.f32.mrb[0].mxu0
      %v1285 = vpop.f32.mrb[0].mxu0
      %v1286 = vpop.f32.mrb[0].mxu0
      %1287 = vdwg.mxu0
      %v1288 = vmax.f32 %v1283, 0.0
      %v1289 = vpack.c.bf16 %v1288, %v1288
      %v1290 = vld [vmem:[%s13] sm:$0xf]
      %v1291 = vld [vmem:[%s13 + $0x4] sm:$0xf]
      %v1292 = vld [vmem:[%s13 + $0x8] sm:$0xf]
      %v1293 = vld [vmem:[%s13 + $0xc] sm:$0xf]
      %v1294 = vld [vmem:[%s14] sm:$0x1]
      %v1296 = vlaneseq
      %v1297 = vshrl.u32 %v1296, 7
      %v1298 = vsub.s32 0, %v1297
      %v1299 = vrot.slane %v1294, %v1298
      %v1305 = vunpack.c.l.b16 %v1290
      %v1306 = vunpack.c.l.b16 %v1291
      %v1307 = vunpack.c.l.b16 %v1292
      %v1308 = vunpack.c.l.b16 %v1293
      %v1309 = vpack.c.b16 %v1306, %v1305
      %v1310 = vpack.c.b16 %v1308, %v1307
      %v1314 = vsel %vm540, %v1289, 0
      %1316 = vmatprep.subr.bf16.mxu0 0
      %1317 = vmatpush1.bf16.msra.mxu0 %v1309
      %1318 = vmatprep.subr.bf16.mxu0 0
      %1319 = vmatpush1.bf16.msra.mxu0 %v1310
      %1320 = vmatprep.subr.bf16.mxu0 0
      %1321 = vmatpush1.bf16.msra.mxu0 0
      %1322 = vmatprep.subr.bf16.mxu0 0
      %1323 = vmatpush1.bf16.msra.mxu0 0
      %1324 = vmatprep.subr.bf16.mxu0 0
      %1325 = vmatpush1.bf16.msra.mxu0 0
      %1326 = vmatprep.subr.bf16.mxu0 0
      %1327 = vmatpush1.bf16.msra.mxu0 0
      %1328 = vmatprep.subr.bf16.mxu0 0
      %1329 = vmatpush1.bf16.msra.mxu0 0
      %1330 = vmatprep.subr.bf16.mxu0 0
      %1331 = vmatpush1.bf16.msra.mxu0 0
      %1332 = vmatprep.subr.bf16.mxu0 0
      %1333 = vmatpush1.bf16.msra.mxu0 0
      %1334 = vmatprep.subr.bf16.mxu0 0
      %1335 = vmatpush1.bf16.msra.mxu0 0
      %1336 = vmatprep.subr.bf16.mxu0 0
      %1337 = vmatpush1.bf16.msra.mxu0 0
      %1338 = vmatprep.subr.bf16.mxu0 0
      %1339 = vmatpush1.bf16.msra.mxu0 0
      %1340 = vmatprep.subr.bf16.mxu0 0
      %1341 = vmatpush1.bf16.msra.mxu0 0
      %1342 = vmatprep.subr.bf16.mxu0 0
      %1343 = vmatpush1.bf16.msra.mxu0 0
      %1344 = vmatprep.subr.bf16.mxu0 0
      %1345 = vmatpush1.bf16.msra.mxu0 0
      %1346 = vmatprep.subr.bf16.mxu0 0
      %1347 = vmatpush1.bf16.msra.mxu0 0
      %1348 = vmatprep.mubr.bf16.mxu0 0
      %1349 = vmatmul.mubr.bf16.gmra.mrb[0].mxu0 %v1314
      %v1350 = vpop.f32.mrb[0].mxu0
      %v1351 = vadd.f32 %v1299, %v1350
      %v1352 = vpop.f32.mrb[0].mxu0
      %v1353 = vpop.f32.mrb[0].mxu0
      %v1354 = vpop.f32.mrb[0].mxu0
      %1355 = vdwg.mxu0
      %1356 = vst [vmem:[%s506] sm:$0xff] %v1351
      %p1357 = scmp.lt.s32.totalorder %s26, 1
      %s1358 = scalar_select %p1357, %s26, 1
      %s1359 = smul.addr %s1358, 8
      %s1360 = scalar_lea.vmem %s15, %s1359
      // Predicated region
      $region81: #{stitch_forward.1} parent=79 // pred_check
        %p1361 = pneg %p369
      $region82: #{stitch_forward.1} parent=79 // pred_check_branch
        %1363 = sbr.rel (%p1361) target = $region84
      $region83: #{stitch_forward.1} parent=79 // pred_region
        _
      $region84: #{stitch_forward.1} parent=79 // pred_fallthru
        _
    $region80: #{stitch_forward.1} parent=5 // pred_fallthru
      _
    %p1364 = scmp.le.s32.totalorder 2, %s21
    // Predicated region
    $region85: #{stitch_forward.1} parent=5 // pred_check
      %p1365 = pneg %p1364
    $region86: #{stitch_forward.1} parent=5 // pred_check_branch
      %1367 = sbr.rel (%p1365) target = $region88
    $region87: #{stitch_forward.1} parent=5 // pred_region
      %s1368 = ssub.s32 %s21, 2
      // Predicated region
      $region89: #{stitch_forward.1} parent=87 // pred_check
        %p1369 = pneg %p375
      $region90: #{stitch_forward.1} parent=87 // pred_check_branch
        %1371 = sbr.rel (%p1369) target = $region92
      $region91: #{stitch_forward.1} parent=87 // pred_region
        %p1372 = scmp.lt.s32.totalorder %s27, 1
        %s1373 = scalar_select %p1372, %s27, 1
        %s1374 = smul.addr %s1373, 8
        %s1375 = scalar_lea.vmem %s15, %s1374
      $region92: #{stitch_forward.1} parent=87 // pred_fallthru
        _
    $region88: #{stitch_forward.1} parent=5 // pred_fallthru
      _
  $region6: #{stitch_forward.1} parent=0 // loop_footer
    %s25 = sadd.s32 1, %s21
  $region7: #{stitch_forward.1} parent=0 // loop_footer_branch
    %20 = sbr.rel target = $region3
  $region8: #{stitch_forward.1} parent=0 // loop_exit
    _

</llo_original>
